<compile_context>
chip_gen: v7x
topology: tpu7x:2x2x1
jax: 0.10.0
libtpu: 0.0.40
codegen_flags: <defaults>
</compile_context>

<pallas_src>
import functools

import jax
import jax.numpy as jnp
from jax.experimental import pallas as pl
from jax.experimental.pallas import tpu as pltpu


def _round_up(x, m):
    return (x + m - 1) // m * m


def _vmem_limit(working_set_bytes):
    # Floor at the default scoped limit, cap at 48 MiB so v7x (64 MiB physical
    # VMEM per TensorCore) keeps headroom for compiler-internal scratch.
    return int(min(max(working_set_bytes + (16 << 20), 32 << 20), 48 << 20))


# ----------------------------------------------------------------------------
# Pallas kernel 1: matmul + bias  (offset / modulation predictor)
# ----------------------------------------------------------------------------
def _matmul_bias_kernel(a_ref, w_ref, b_ref, o_ref):
    acc = jnp.dot(a_ref[...], w_ref[...], preferred_element_type=jnp.float32)
    o_ref[...] = (acc + b_ref[...]).astype(o_ref.dtype)


def pallas_matmul_bias(a, w, b, tm=512):
    """a:(M,K) @ w:(K,N) + b:(N,) -> (M,N), f32.

    Only N is zero-padded to a 128 multiple (lane-dense stores); K stays at
    its true width (BlockSpec last dim == full extent). Kept in f32 so the
    predicted sampling offsets keep full precision."""
    M, K = a.shape
    N = w.shape[1]
    Np = _round_up(N, 128)
    tm = min(tm, _round_up(M, 8))
    Mp = _round_up(M, tm)

    a_p = jnp.pad(a, ((0, Mp - M), (0, 0)))
    w_p = jnp.pad(w, ((0, 0), (0, Np - N)))
    b_p = jnp.pad(b, (0, Np - N)).reshape(1, Np)

    ws = 2 * (tm * K + tm * Np) * 4 + (K * Np + Np) * 4
    cost = pl.CostEstimate(
        flops=2 * Mp * K * Np,
        transcendentals=0,
        bytes_accessed=4 * (Mp * K + K * Np + Np + Mp * Np))

    out = pl.pallas_call(
        _matmul_bias_kernel,
        out_shape=jax.ShapeDtypeStruct((Mp, Np), jnp.float32),
        grid=(Mp // tm,),
        in_specs=[pl.BlockSpec((tm, K), lambda i: (i, 0)),
                  pl.BlockSpec((K, Np), lambda i: (0, 0)),
                  pl.BlockSpec((1, Np), lambda i: (0, 0))],
        out_specs=pl.BlockSpec((tm, Np), lambda i: (i, 0)),
        compiler_params=pltpu.CompilerParams(
            dimension_semantics=("parallel",),
            vmem_limit_bytes=_vmem_limit(ws)),
        cost_estimate=cost,
    )(a_p, w_p, b_p)
    return out[:M, :N]


# ----------------------------------------------------------------------------
# Pallas kernel 2: fused bilinear broadcast + combine + main deformable conv
# ----------------------------------------------------------------------------
def _deform_fused_kernel(x_ref, g_ref, s_ref, w_ref, o_ref):
    # x_ref : (1, TM, 4*CK) bf16  gathered corners, J = q*CK + n*C + c
    # g_ref : (1, TM, 4*N)  bf16  bilinear (and modulation-scaled) weights
    # s_ref : (4*N, 4*CK)   bf16  0/1 block-diag scatter: broadcast g over c
    # w_ref : (4*CK, OCp)   bf16  main-conv weight tiled over the 4 corners
    # One bf16 single-pass broadcast matmul for all 4 corners at once.
    gb = jnp.dot(g_ref[0], s_ref[...], preferred_element_type=jnp.float32)
    # Combine in f32 (portable to v5e's f32-only VPU); the 4-corner sum is
    # folded into the main matmul contraction below.
    y = gb * x_ref[0].astype(jnp.float32)
    o_ref[0] = jnp.dot(y.astype(w_ref.dtype), w_ref[...],
                       preferred_element_type=jnp.float32).astype(o_ref.dtype)


def deform_conv_matmul(x_all, g_all, s4, w4, tm):
    """x_all:(B,HWp,4CK) bf16; g_all:(B,HWp,4N) bf16; s4:(4N,4CK) bf16;
    w4:(4CK,OCp) bf16 -> (B,HWp,OCp) f32."""
    B, HWp, CK4 = x_all.shape
    N4 = g_all.shape[-1]
    OCp = w4.shape[1]
    nm = HWp // tm

    # Double-buffered streamed tiles + resident S4/W4 blocks.
    ws = (2 * (tm * CK4 * 2 + tm * N4 * 2 + tm * OCp * 4)
          + N4 * CK4 * 2 + CK4 * OCp * 2)
    cost = pl.CostEstimate(
        flops=2 * B * HWp * (N4 * CK4 + CK4 * OCp) + B * HWp * CK4,
        transcendentals=0,
        bytes_accessed=(B * HWp * (CK4 * 2 + N4 * 2 + OCp * 4)
                        + N4 * CK4 * 2 + CK4 * OCp * 2))

    return pl.pallas_call(
        _deform_fused_kernel,
        out_shape=jax.ShapeDtypeStruct((B, HWp, OCp), jnp.float32),
        grid=(nm, B),
        in_specs=[pl.BlockSpec((1, tm, CK4), lambda t, b: (b, t, 0)),
                  pl.BlockSpec((1, tm, N4), lambda t, b: (b, t, 0)),
                  pl.BlockSpec((N4, CK4), lambda t, b: (0, 0)),
                  pl.BlockSpec((CK4, OCp), lambda t, b: (0, 0))],
        out_specs=pl.BlockSpec((1, tm, OCp), lambda t, b: (b, t, 0)),
        compiler_params=pltpu.CompilerParams(
            dimension_semantics=("parallel", "parallel"),
            vmem_limit_bytes=_vmem_limit(ws)),
        cost_estimate=cost,
    )(x_all, g_all, s4, w4)


# ----------------------------------------------------------------------------
# Plain-JAX glue (im2col, sampling-grid bookkeeping, data-dependent gather)
# ----------------------------------------------------------------------------
def _im2col(x, ksz, stride, pad):
    B, C, H, W = x.shape
    xp = jnp.pad(x, ((0, 0), (0, 0), (pad, pad), (pad, pad)))
    Ho = (H + 2 * pad - ksz) // stride + 1
    Wo = (W + 2 * pad - ksz) // stride + 1
    cols = []
    for kh in range(ksz):
        for kw in range(ksz):
            cols.append(xp[:, :, kh:kh + Ho * stride:stride,
                           kw:kw + Wo * stride:stride])
    pt = jnp.stack(cols, axis=2)                       # (B, C, k*k, Ho, Wo)
    pt = pt.transpose(0, 3, 4, 1, 2).reshape(B * Ho * Wo, C * ksz * ksz)
    return pt, Ho, Wo


def deform_conv2d_forward(x, params, ks=3, padding=1, stride=1,
                          modulation=False, use_pallas=True):
    B, C, H, W = x.shape
    N = ks * ks

    # ---- offset (+ modulation) predictor: p_conv & m_conv fused into one
    #      im2col + one matmul (bias added in-kernel) ------------------------
    patches, h, w = _im2col(x, 3, stride, 1)           # (B*h*w, C*9)
    if modulation:
        pred_w = jnp.concatenate([params["p_w"].reshape(2 * N, -1),
                                  params["m_w"].reshape(N, -1)], axis=0)
        pred_b = jnp.concatenate([params["p_b"], params["m_b"]])
    else:
        pred_w = params["p_w"].reshape(2 * N, -1)
        pred_b = params["p_b"]
    if use_pallas:
        pred = pallas_matmul_bias(patches, pred_w.T, pred_b)
    else:
        pred = patches @ pred_w.T + pred_b
    pred = pred.reshape(B, h, w, -1)
    offset = pred[..., :2 * N].transpose(0, 3, 1, 2)        # (B, 2N, h, w)
    if modulation:
        m = jax.nn.sigmoid(pred[..., 2 * N:])               # (B, h, w, N)

    if padding:
        x_pad = jnp.pad(x, ((0, 0), (0, 0), (padding, padding),
                            (padding, padding)))
    else:
        x_pad = x
    Hp, Wp = x_pad.shape[2], x_pad.shape[3]

    # ---- p = p_0 + p_n + offset: exact replication of the reference module's
    #      'xy'-indexed meshgrid + flatten + view bookkeeping ----------------
    r = jnp.arange(-(ks - 1) // 2, (ks - 1) // 2 + 1)
    pnx, pny = jnp.meshgrid(r, r, indexing="xy")
    p_n = jnp.concatenate([pnx.reshape(-1), pny.reshape(-1)]
                          ).astype(jnp.float32).reshape(1, 2 * N, 1, 1)

    ax = jnp.arange(1, h * stride + 1, stride)
    ay = jnp.arange(1, w * stride + 1, stride)
    p0x, p0y = jnp.meshgrid(ax, ay, indexing="xy")
    p0x = jnp.tile(p0x.reshape(-1).reshape(1, 1, h, w), (1, N, 1, 1))
    p0y = jnp.tile(p0y.reshape(-1).reshape(1, 1, h, w), (1, N, 1, 1))
    p_0 = jnp.concatenate([p0x, p0y], axis=1).astype(jnp.float32)

    p = (p_0 + p_n + offset).transpose(0, 2, 3, 1)      # (B, h, w, 2N)

    q_lt = jnp.floor(p)
    q_rb = q_lt + 1.0
    q_lt = jnp.concatenate([jnp.clip(q_lt[..., :N], 0, Hp - 1),
                            jnp.clip(q_lt[..., N:], 0, Wp - 1)],
                           -1).astype(jnp.int32)
    q_rb = jnp.concatenate([jnp.clip(q_rb[..., :N], 0, Hp - 1),
                            jnp.clip(q_rb[..., N:], 0, Wp - 1)],
                           -1).astype(jnp.int32)
    q_lb = jnp.concatenate([q_lt[..., :N], q_rb[..., N:]], -1)
    q_rt = jnp.concatenate([q_rb[..., :N], q_lt[..., N:]], -1)
    p = jnp.concatenate([jnp.clip(p[..., :N], 0, Hp - 1),
                         jnp.clip(p[..., N:], 0, Wp - 1)], -1)

    def bilinear_w(q, sx, sy):
        qf = q.astype(jnp.float32)
        return ((1.0 + sx * (qf[..., :N] - p[..., :N])) *
                (1.0 + sy * (qf[..., N:] - p[..., N:])))

    g_lt = bilinear_w(q_lt, +1.0, +1.0)
    g_rb = bilinear_w(q_rb, -1.0, -1.0)
    g_lb = bilinear_w(q_lb, +1.0, -1.0)
    g_rt = bilinear_w(q_rt, -1.0, +1.0)

    HW = h * w
    CK = N * C                              # contraction index j = n*C + c
    outc = params["w"].shape[0]

    # main conv (kernel ks, stride ks over the ks-expanded grid, no bias)
    # == matmul over j = n*C + c  with  w_nc[o, n*C + c] = W[o, c, kh, kw]
    w_nc = params["w"].reshape(outc, C, N).transpose(0, 2, 1).reshape(outc, CK)

    # ---- fused corner gather (bf16 in the Pallas path to halve HBM traffic)
    # TODO(synk): the per-pixel data-dependent corner gather has no clean
    # Pallas TPU equivalent (dynamic per-element indices); kept in XLA as one
    # fused take_along_axis over all 4 corners.
    x_cl = x_pad.transpose(0, 2, 3, 1).reshape(B, Hp * Wp, C)   # channels-last
    x_cl = x_cl.astype(jnp.bfloat16 if use_pallas else jnp.float32)

    def corner_idx(q):
        return q[..., :N] * Wp + q[..., N:]                     # (B, h, w, N)

    idx = jnp.stack([corner_idx(q_lt), corner_idx(q_rb),
                     corner_idx(q_lb), corner_idx(q_rt)], axis=3)  # (B,h,w,4,N)
    x_all = jnp.take_along_axis(x_cl, idx.reshape(B, HW * 4 * N, 1), axis=1)
    x_all = x_all.reshape(B, HW, 4 * CK)        # J = q*CK + n*C + c

    gs = [g_lt, g_rb, g_lb, g_rt]
    if modulation:
        gs = [g * m for g in gs]                # x_offset *= m <=> scale g
    g_all = jnp.stack(gs, axis=3).reshape(B, HW, 4 * N)   # index q*N + n

    if not use_pallas:
        # Pure-JAX f32 reference of the fused kernel (tolerance check).
        g4 = g_all.reshape(B, HW, 4, N, 1)
        x4 = x_all.reshape(B, HW, 4, N, C).astype(jnp.float32)
        x_off = jnp.sum(g4 * x4, axis=2).reshape(B, HW, CK)
        out = jnp.einsum('bmj,oj->bmo', x_off, w_nc)
        return out.transpose(0, 2, 1).reshape(B, outc, h, w)

    # ---- Pallas main-conv path ----------------------------------------------
    # NOTE: on v6e/v7x with outc >= 256, rounding OC to 256 fills full MXU
    # tiles; 128 keeps padded store traffic minimal for small OC (demo).
    OCp = _round_up(outc, 128)
    tm = min(512, _round_up(HW, 8))             # raise toward 1024 on v5e/v6e
    HWp = _round_up(HW, tm)

    x_all = jnp.pad(x_all, ((0, 0), (0, HWp - HW), (0, 0)))          # bf16
    g_all = jnp.pad(g_all.astype(jnp.bfloat16),
                    ((0, 0), (0, HWp - HW), (0, 0)))

    # block-diagonal 0/1 scatter: S4[q*N + n, q'*CK + n'*C + c] = (q==q')(n==n')
    row = jnp.arange(4 * N)
    col = jnp.arange(4 * CK)
    s4 = (((row[:, None] // N) == (col[None, :] // CK)) &
          ((row[:, None] % N) == ((col[None, :] % CK) // C))
          ).astype(jnp.bfloat16)

    w4 = jnp.tile(w_nc.T, (4, 1))                                    # (4CK, OC)
    w4 = jnp.pad(w4, ((0, 0), (0, OCp - outc))).astype(jnp.bfloat16)

    out = deform_conv_matmul(x_all, g_all, s4, w4, tm)    # (B, HWp, OCp) f32
    out = out[:, :HW, :outc].transpose(0, 2, 1).reshape(B, outc, h, w)
    return out


# ----------------------------------------------------------------------------
# Deterministic parameter init (shapes from the module's __init__)
# ----------------------------------------------------------------------------
def init_params(key, inc, outc, ks, modulation=False):
    k1, k2, k3, k4, k5 = jax.random.split(key, 5)
    bound = 1.0 / (inc * ks * ks) ** 0.5
    w = jax.random.uniform(k1, (outc, inc, ks, ks), jnp.float32, -bound, bound)
    # The module zero-inits p_conv.weight; small deterministic random values
    # are used here so the deformable sampling path is actually exercised.
    p_w = 0.1 * jax.random.normal(k2, (2 * ks * ks, inc, 3, 3), jnp.float32)
    p_b = jax.random.uniform(k3, (2 * ks * ks,), jnp.float32, -0.5, 0.5)
    params = {"w": w, "p_w": p_w, "p_b": p_b}
    if modulation:
        params["m_w"] = 0.1 * jax.random.normal(k4, (ks * ks, inc, 3, 3),
                                                jnp.float32)
        params["m_b"] = jax.random.uniform(k5, (ks * ks,), jnp.float32,
                                           -0.5, 0.5)
    return params


if __name__ == "__main__":
    key = jax.random.PRNGKey(0)
    kx, kp = jax.random.split(key)
    B, C, H, W = 2, 4, 16, 16
    outc, ks = 8, 3

    x = jax.random.normal(kx, (B, C, H, W), jnp.float32)

    for modulation in (False, True):
        params = init_params(kp, C, outc, ks, modulation=modulation)
        fwd = jax.jit(functools.partial(deform_conv2d_forward, ks=ks,
                                        padding=1, stride=1,
                                        modulation=modulation,
                                        use_pallas=True))
        ref = jax.jit(functools.partial(deform_conv2d_forward, ks=ks,
                                        padding=1, stride=1,
                                        modulation=modulation,
                                        use_pallas=False))
        out = fwd(x, params)
        out_ref = ref(x, params)
        jax.block_until_ready((out, out_ref))

        assert out.shape == (B, outc, H, W), out.shape
        assert bool(jnp.all(jnp.isfinite(out)))
        err = float(jnp.max(jnp.abs(out - out_ref)))
        scale = float(jnp.max(jnp.abs(out_ref)))
        assert err <= 5e-2 * (1.0 + scale), (err, scale)

    print("KERNEL_OK")
</pallas_src>

<mosaic_0001>
module attributes {stable_mosaic.version = 11 : i64} {
  func.func @_matmul_bias_kernel(%arg0: i32, %arg1: memref<512x36xf32, #tpu.memory_space<vmem>>, %arg2: memref<36x128xf32, #tpu.memory_space<vmem>>, %arg3: memref<1x128xf32, #tpu.memory_space<vmem>>, %arg4: memref<512x128xf32, #tpu.memory_space<vmem>>) attributes {dimension_semantics = [#tpu.dimension_semantics<parallel>], iteration_bounds = array<i64: 1>, scalar_prefetch = 0 : i64, scratch_operands = 0 : i64, tpu.core_type = #tpu.core_type<tc>, window_params = [{transform_indices = @transform_0, window_bounds = array<i64: 512, 36>}, {pipeline_mode = #tpu.pipeline_mode<synchronous>, transform_indices = @transform_1, window_bounds = array<i64: 36, 128>}, {pipeline_mode = #tpu.pipeline_mode<synchronous>, transform_indices = @transform_2, window_bounds = array<i64: 1, 128>}, {transform_indices = @transform_3, window_bounds = array<i64: 512, 128>}]} {
    %c0 = arith.constant 0 : index
    %c0_0 = arith.constant 0 : index
    %0 = vector.load %arg1[%c0, %c0_0] : memref<512x36xf32, #tpu.memory_space<vmem>>, vector<512x36xf32>
    %c0_1 = arith.constant 0 : index
    %c0_2 = arith.constant 0 : index
    %1 = vector.load %arg2[%c0_1, %c0_2] : memref<36x128xf32, #tpu.memory_space<vmem>>, vector<36x128xf32>
    %cst = arith.constant dense<0.000000e+00> : vector<512x128xf32>
    %2 = tpu.matmul %0, %1, %cst {dimension_numbers = #tpu.dot_dimension_numbers<[1], [0], [0], [1], [0, 0, 1, 1], [], []>} : vector<512x36xf32>, vector<36x128xf32>, vector<512x128xf32> -> vector<512x128xf32>
    %c0_3 = arith.constant 0 : index
    %c0_4 = arith.constant 0 : index
    %3 = vector.load %arg3[%c0_3, %c0_4] : memref<1x128xf32, #tpu.memory_space<vmem>>, vector<1x128xf32>
    %4 = vector.broadcast %3 : vector<1x128xf32> to vector<512x128xf32>
    %5 = arith.addf %2, %4 : vector<512x128xf32>
    %c0_5 = arith.constant 0 : index
    %c0_6 = arith.constant 0 : index
    %6 = vector.load %arg4[%c0_5, %c0_6] : memref<512x128xf32, #tpu.memory_space<vmem>>, vector<512x128xf32>
    tpu.vector_store %arg4[%c0_5, %c0_6], %5 {strides = array<i32>} : memref<512x128xf32, #tpu.memory_space<vmem>>, vector<512x128xf32>,
    return
  }
  func.func @transform_0(%arg0: i32) -> (i32, i32) {
    %c0_i32 = arith.constant 0 : i32
    %c0_i32_0 = arith.constant 0 : i32
    return %arg0, %c0_i32 : i32, i32
  }
  func.func @transform_1(%arg0: i32) -> (i32, i32) {
    %c0_i32 = arith.constant 0 : i32
    %c0_i32_0 = arith.constant 0 : i32
    %c0_i32_1 = arith.constant 0 : i32
    return %c0_i32, %c0_i32_0 : i32, i32
  }
  func.func @transform_2(%arg0: i32) -> (i32, i32) {
    %c0_i32 = arith.constant 0 : i32
    %c0_i32_0 = arith.constant 0 : i32
    %c0_i32_1 = arith.constant 0 : i32
    return %c0_i32, %c0_i32_0 : i32, i32
  }
  func.func @transform_3(%arg0: i32) -> (i32, i32) {
    %c0_i32 = arith.constant 0 : i32
    %c0_i32_0 = arith.constant 0 : i32
    return %arg0, %c0_i32 : i32, i32
  }
}

module attributes {stable_mosaic.version = 11 : i64} {
  func.func @_deform_fused_kernel(%arg0: i32, %arg1: i32, %arg2: memref<1x256x144xbf16, #tpu.memory_space<vmem>>, %arg3: memref<1x256x36xbf16, #tpu.memory_space<vmem>>, %arg4: memref<36x144xbf16, #tpu.memory_space<vmem>>, %arg5: memref<144x128xbf16, #tpu.memory_space<vmem>>, %arg6: memref<1x256x128xf32, #tpu.memory_space<vmem>>) attributes {dimension_semantics = [#tpu.dimension_semantics<parallel>, #tpu.dimension_semantics<parallel>], iteration_bounds = array<i64: 1, 2>, scalar_prefetch = 0 : i64, scratch_operands = 0 : i64, tpu.core_type = #tpu.core_type<tc>, window_params = [{transform_indices = @transform_0, window_bounds = array<i64: 1, 256, 144>}, {transform_indices = @transform_1, window_bounds = array<i64: 1, 256, 36>}, {pipeline_mode = #tpu.pipeline_mode<synchronous>, transform_indices = @transform_2, window_bounds = array<i64: 36, 144>}, {pipeline_mode = #tpu.pipeline_mode<synchronous>, transform_indices = @transform_3, window_bounds = array<i64: 144, 128>}, {transform_indices = @transform_4, window_bounds = array<i64: 1, 256, 128>}]} {
    %c0 = arith.constant 0 : index
    %c0_0 = arith.constant 0 : index
    %c0_1 = arith.constant 0 : index
    %0 = vector.load %arg3[%c0, %c0_0, %c0_1] : memref<1x256x36xbf16, #tpu.memory_space<vmem>>, vector<1x256x36xbf16>
    %1 = vector.shape_cast %0 : vector<1x256x36xbf16> to vector<256x36xbf16>
    %c0_2 = arith.constant 0 : index
    %c0_3 = arith.constant 0 : index
    %2 = vector.load %arg4[%c0_2, %c0_3] : memref<36x144xbf16, #tpu.memory_space<vmem>>, vector<36x144xbf16>
    %cst = arith.constant dense<0.000000e+00> : vector<256x144xf32>
    %3 = tpu.matmul %1, %2, %cst {dimension_numbers = #tpu.dot_dimension_numbers<[1], [0], [0], [1], [0, 0, 1, 1], [], []>} : vector<256x36xbf16>, vector<36x144xbf16>, vector<256x144xf32> -> vector<256x144xf32>
    %c0_4 = arith.constant 0 : index
    %c0_5 = arith.constant 0 : index
    %c0_6 = arith.constant 0 : index
    %4 = vector.load %arg2[%c0_4, %c0_5, %c0_6] : memref<1x256x144xbf16, #tpu.memory_space<vmem>>, vector<1x256x144xbf16>
    %5 = vector.shape_cast %4 : vector<1x256x144xbf16> to vector<256x144xbf16>
    %6 = arith.extf %5 : vector<256x144xbf16> to vector<256x144xf32>
    %7 = arith.mulf %3, %6 : vector<256x144xf32>
    %8 = arith.truncf %7 : vector<256x144xf32> to vector<256x144xbf16>
    %c0_7 = arith.constant 0 : index
    %c0_8 = arith.constant 0 : index
    %9 = vector.load %arg5[%c0_7, %c0_8] : memref<144x128xbf16, #tpu.memory_space<vmem>>, vector<144x128xbf16>
    %cst_9 = arith.constant dense<0.000000e+00> : vector<256x128xf32>
    %10 = tpu.matmul %8, %9, %cst_9 {dimension_numbers = #tpu.dot_dimension_numbers<[1], [0], [0], [1], [0, 0, 1, 1], [], []>} : vector<256x144xbf16>, vector<144x128xbf16>, vector<256x128xf32> -> vector<256x128xf32>
    %c0_10 = arith.constant 0 : index
    %c0_11 = arith.constant 0 : index
    %c0_12 = arith.constant 0 : index
    %11 = vector.load %arg6[%c0_10, %c0_11, %c0_12] : memref<1x256x128xf32, #tpu.memory_space<vmem>>, vector<1x256x128xf32>
    %12 = vector.shape_cast %11 : vector<1x256x128xf32> to vector<256x128xf32>
    %13 = vector.shape_cast %10 : vector<256x128xf32> to vector<1x256x128xf32>
    tpu.vector_store %arg6[%c0_10, %c0_11, %c0_12], %13 {strides = array<i32>} : memref<1x256x128xf32, #tpu.memory_space<vmem>>, vector<1x256x128xf32>,
    return
  }
  func.func @transform_0(%arg0: i32, %arg1: i32) -> (i32, i32, i32) {
    %c0_i32 = arith.constant 0 : i32
    %c0_i32_0 = arith.constant 0 : i32
    return %arg1, %arg0, %c0_i32 : i32, i32, i32
  }
  func.func @transform_1(%arg0: i32, %arg1: i32) -> (i32, i32, i32) {
    %c0_i32 = arith.constant 0 : i32
    %c0_i32_0 = arith.constant 0 : i32
    return %arg1, %arg0, %c0_i32 : i32, i32, i32
  }
  func.func @transform_2(%arg0: i32, %arg1: i32) -> (i32, i32) {
    %c0_i32 = arith.constant 0 : i32
    %c0_i32_0 = arith.constant 0 : i32
    %c0_i32_1 = arith.constant 0 : i32
    return %c0_i32, %c0_i32_0 : i32, i32
  }
  func.func @transform_3(%arg0: i32, %arg1: i32) -> (i32, i32) {
    %c0_i32 = arith.constant 0 : i32
    %c0_i32_0 = arith.constant 0 : i32
    %c0_i32_1 = arith.constant 0 : i32
    return %c0_i32, %c0_i32_0 : i32, i32
  }
  func.func @transform_4(%arg0: i32, %arg1: i32) -> (i32, i32, i32) {
    %c0_i32 = arith.constant 0 : i32
    %c0_i32_0 = arith.constant 0 : i32
    return %arg1, %arg0, %c0_i32 : i32, i32, i32
  }
}

</mosaic_0001>

<llo_original>
// kernel: deform_conv2d_forward.2
$region0: #{deform_conv2d_forward.2}
  #allocation0 [shape = 'u32[]', space=smem, size = 0x4, offset = 0x4, fixed_abs, tag = 'smem constant byte address 0x4 - core index']
  #allocation1 [shape = 'u32[144,128]{1,0:T(1,128)}', space=vmem, size = 0x12000, scoped, tag = 'internal scratch']
  %s0 = inlined_call_operand.vmem [shape: f32[512,36], index: 0, kind: input, shape index: {}]
  %s1 = inlined_call_operand.vmem [shape: f32[36,128], index: 1, kind: input, shape index: {}]
  %s2 = inlined_call_operand.vmem [shape: f32[1,128], index: 2, kind: input, shape index: {}]
  %s3 = inlined_call_operand.vmem [shape: f32[512,128], index: 3, kind: output, shape index: {}]
  %s4 = sld [smem:[#allocation0]]
  $region22: #{deform_conv2d_forward.2} parent=0
    _
  %s6 = ssub.s32 1, %s4
  %s7 = scalar_select 0, %s6, %s4
  // Predicated region
  $region2: #{deform_conv2d_forward.2} parent=0 // pred_check
    _
  $region3: #{deform_conv2d_forward.2} parent=0 // pred_check_branch
    %9 = sbr.rel (0) target = $region5
  $region4: #{deform_conv2d_forward.2} parent=0 // pred_region
    _
  $region5: #{deform_conv2d_forward.2} parent=0 // pred_fallthru
    _
  // Predicated region
  $region6: #{deform_conv2d_forward.2} parent=0 // pred_check
    _
  $region7: #{deform_conv2d_forward.2} parent=0 // pred_check_branch
    %11 = sbr.rel (0) target = $region9
  $region8: #{deform_conv2d_forward.2} parent=0 // pred_region
    _
  $region9: #{deform_conv2d_forward.2} parent=0 // pred_fallthru
    _
  // Predicated region
  $region10: #{deform_conv2d_forward.2} parent=0 // pred_check
    _
  $region11: #{deform_conv2d_forward.2} parent=0 // pred_check_branch
    %13 = sbr.rel (0) target = $region13
  $region12: #{deform_conv2d_forward.2} parent=0 // pred_region
    _
  $region13: #{deform_conv2d_forward.2} parent=0 // pred_fallthru
    _
  %v14 = vld [vmem:[%s0] sm:$0xff]
  %v15 = vld [vmem:[%s0 + $0x8] sm:$0xff]
  %v16 = vld [vmem:[%s0 + $0x10] sm:$0xff]
  %v17 = vld [vmem:[%s0 + $0x18] sm:$0xff]
  %v18 = vld [vmem:[%s0 + $0x20] sm:$0xff]
  %v19 = vld [vmem:[%s0 + $0x28] sm:$0xff]
  %v20 = vld [vmem:[%s0 + $0x30] sm:$0xff]
  %v21 = vld [vmem:[%s0 + $0x38] sm:$0xff]
  %v22 = vld [vmem:[%s0 + $0x40] sm:$0xff]
  %v23 = vld [vmem:[%s0 + $0x48] sm:$0xff]
  %v24 = vld [vmem:[%s0 + $0x50] sm:$0xff]
  %v25 = vld [vmem:[%s0 + $0x58] sm:$0xff]
  %v26 = vld [vmem:[%s0 + $0x60] sm:$0xff]
  %v27 = vld [vmem:[%s0 + $0x68] sm:$0xff]
  %v28 = vld [vmem:[%s0 + $0x70] sm:$0xff]
  %v29 = vld [vmem:[%s0 + $0x78] sm:$0xff]
  %v30 = vld [vmem:[%s0 + $0x80] sm:$0xff]
  %v31 = vld [vmem:[%s0 + $0x88] sm:$0xff]
  %v32 = vld [vmem:[%s0 + $0x90] sm:$0xff]
  %v33 = vld [vmem:[%s0 + $0x98] sm:$0xff]
  %v34 = vld [vmem:[%s0 + $0xa0] sm:$0xff]
  %v35 = vld [vmem:[%s0 + $0xa8] sm:$0xff]
  %v36 = vld [vmem:[%s0 + $0xb0] sm:$0xff]
  %v37 = vld [vmem:[%s0 + $0xb8] sm:$0xff]
  %v38 = vld [vmem:[%s0 + $0xc0] sm:$0xff]
  %v39 = vld [vmem:[%s0 + $0xc8] sm:$0xff]
  %v40 = vld [vmem:[%s0 + $0xd0] sm:$0xff]
  %v41 = vld [vmem:[%s0 + $0xd8] sm:$0xff]
  %v42 = vld [vmem:[%s0 + $0xe0] sm:$0xff]
  %v43 = vld [vmem:[%s0 + $0xe8] sm:$0xff]
  %v44 = vld [vmem:[%s0 + $0xf0] sm:$0xff]
  %v45 = vld [vmem:[%s0 + $0xf8] sm:$0xff]
  %v46 = vld [vmem:[%s0 + $0x100] sm:$0xff]
  %v47 = vld [vmem:[%s0 + $0x108] sm:$0xff]
  %v48 = vld [vmem:[%s0 + $0x110] sm:$0xff]
  %v49 = vld [vmem:[%s0 + $0x118] sm:$0xff]
  %v50 = vld [vmem:[%s0 + $0x120] sm:$0xff]
  %v51 = vld [vmem:[%s0 + $0x128] sm:$0xff]
  %v52 = vld [vmem:[%s0 + $0x130] sm:$0xff]
  %v53 = vld [vmem:[%s0 + $0x138] sm:$0xff]
  %v54 = vld [vmem:[%s0 + $0x140] sm:$0xff]
  %v55 = vld [vmem:[%s0 + $0x148] sm:$0xff]
  %v56 = vld [vmem:[%s0 + $0x150] sm:$0xff]
  %v57 = vld [vmem:[%s0 + $0x158] sm:$0xff]
  %v58 = vld [vmem:[%s0 + $0x160] sm:$0xff]
  %v59 = vld [vmem:[%s0 + $0x168] sm:$0xff]
  %v60 = vld [vmem:[%s0 + $0x170] sm:$0xff]
  %v61 = vld [vmem:[%s0 + $0x178] sm:$0xff]
  %v62 = vld [vmem:[%s0 + $0x180] sm:$0xff]
  %v63 = vld [vmem:[%s0 + $0x188] sm:$0xff]
  %v64 = vld [vmem:[%s0 + $0x190] sm:$0xff]
  %v65 = vld [vmem:[%s0 + $0x198] sm:$0xff]
  %v66 = vld [vmem:[%s0 + $0x1a0] sm:$0xff]
  %v67 = vld [vmem:[%s0 + $0x1a8] sm:$0xff]
  %v68 = vld [vmem:[%s0 + $0x1b0] sm:$0xff]
  %v69 = vld [vmem:[%s0 + $0x1b8] sm:$0xff]
  %v70 = vld [vmem:[%s0 + $0x1c0] sm:$0xff]
  %v71 = vld [vmem:[%s0 + $0x1c8] sm:$0xff]
  %v72 = vld [vmem:[%s0 + $0x1d0] sm:$0xff]
  %v73 = vld [vmem:[%s0 + $0x1d8] sm:$0xff]
  %v74 = vld [vmem:[%s0 + $0x1e0] sm:$0xff]
  %v75 = vld [vmem:[%s0 + $0x1e8] sm:$0xff]
  %v76 = vld [vmem:[%s0 + $0x1f0] sm:$0xff]
  %v77 = vld [vmem:[%s0 + $0x1f8] sm:$0xff]
  %v78 = vld [vmem:[%s1] sm:$0xff]
  %v79 = vld [vmem:[%s1 + $0x8] sm:$0xff]
  %v80 = vld [vmem:[%s1 + $0x10] sm:$0xff]
  %v81 = vld [vmem:[%s1 + $0x18] sm:$0xff]
  %v82 = vld [vmem:[%s1 + $0x20] sm:$0xf]
  %v83 = vld [vmem:[%s2] sm:$0x1]
  %v85 = vlaneseq
  %v86 = vshrl.u32 %v85, 7
  %v87 = vsub.s32 0, %v86
  %v88 = vrot.slane %v83, %v87
  %vm90 = vcmask 293888
  %v92 = vsel %vm90, %v14, 0
  %v95 = vsel %vm90, %v15, 0
  %v98 = vsel %vm90, %v16, 0
  %v101 = vsel %vm90, %v17, 0
  %v104 = vsel %vm90, %v18, 0
  %v107 = vsel %vm90, %v19, 0
  %v110 = vsel %vm90, %v20, 0
  %v113 = vsel %vm90, %v21, 0
  %v116 = vsel %vm90, %v22, 0
  %v119 = vsel %vm90, %v23, 0
  %v122 = vsel %vm90, %v24, 0
  %v125 = vsel %vm90, %v25, 0
  %v128 = vsel %vm90, %v26, 0
  %v131 = vsel %vm90, %v27, 0
  %v134 = vsel %vm90, %v28, 0
  %v137 = vsel %vm90, %v29, 0
  %v140 = vsel %vm90, %v30, 0
  %v143 = vsel %vm90, %v31, 0
  %v146 = vsel %vm90, %v32, 0
  %v149 = vsel %vm90, %v33, 0
  %v152 = vsel %vm90, %v34, 0
  %v155 = vsel %vm90, %v35, 0
  %v158 = vsel %vm90, %v36, 0
  %v161 = vsel %vm90, %v37, 0
  %v164 = vsel %vm90, %v38, 0
  %v167 = vsel %vm90, %v39, 0
  %v170 = vsel %vm90, %v40, 0
  %v173 = vsel %vm90, %v41, 0
  %v176 = vsel %vm90, %v42, 0
  %v179 = vsel %vm90, %v43, 0
  %v182 = vsel %vm90, %v44, 0
  %v185 = vsel %vm90, %v45, 0
  %v188 = vsel %vm90, %v46, 0
  %v191 = vsel %vm90, %v47, 0
  %v194 = vsel %vm90, %v48, 0
  %v197 = vsel %vm90, %v49, 0
  %v200 = vsel %vm90, %v50, 0
  %v203 = vsel %vm90, %v51, 0
  %v206 = vsel %vm90, %v52, 0
  %v209 = vsel %vm90, %v53, 0
  %v212 = vsel %vm90, %v54, 0
  %v215 = vsel %vm90, %v55, 0
  %v218 = vsel %vm90, %v56, 0
  %v221 = vsel %vm90, %v57, 0
  %v224 = vsel %vm90, %v58, 0
  %v227 = vsel %vm90, %v59, 0
  %v230 = vsel %vm90, %v60, 0
  %v233 = vsel %vm90, %v61, 0
  %v236 = vsel %vm90, %v62, 0
  %v239 = vsel %vm90, %v63, 0
  %v242 = vsel %vm90, %v64, 0
  %v245 = vsel %vm90, %v65, 0
  %v248 = vsel %vm90, %v66, 0
  %v251 = vsel %vm90, %v67, 0
  %v254 = vsel %vm90, %v68, 0
  %v257 = vsel %vm90, %v69, 0
  %v260 = vsel %vm90, %v70, 0
  %v263 = vsel %vm90, %v71, 0
  %v266 = vsel %vm90, %v72, 0
  %v269 = vsel %vm90, %v73, 0
  %v272 = vsel %vm90, %v74, 0
  %v275 = vsel %vm90, %v75, 0
  %v278 = vsel %vm90, %v76, 0
  %v281 = vsel %vm90, %v77, 0
  %vm283 = vcmask 1043456
  %v285 = vsel %vm283, %v82, 0
  %287 = vmatprep.subr.mxu0 0.0
  %288 = vmatpush1.msra.mxu0 %v78
  %289 = vmatprep.subr.mxu0 0.0
  %290 = vmatpush1.msra.mxu0 %v79
  %291 = vmatprep.subr.mxu0 0.0
  %292 = vmatpush1.msra.mxu0 %v80
  %293 = vmatprep.subr.mxu0 0.0
  %294 = vmatpush1.msra.mxu0 %v81
  %295 = vmatprep.subr.mxu0 0.0
  %296 = vmatpush1.msra.mxu0 %v285
  %297 = vmatprep.subr.mxu0 0.0
  %298 = vmatpush1.msra.mxu0 0.0
  %299 = vmatprep.subr.mxu0 0.0
  %300 = vmatpush1.msra.mxu0 0.0
  %301 = vmatprep.subr.mxu0 0.0
  %302 = vmatpush1.msra.mxu0 0.0
  %303 = vmatprep.subr.mxu0 0.0
  %304 = vmatpush1.msra.mxu0 0.0
  %305 = vmatprep.subr.mxu0 0.0
  %306 = vmatpush1.msra.mxu0 0.0
  %307 = vmatprep.subr.mxu0 0.0
  %308 = vmatpush1.msra.mxu0 0.0
  %309 = vmatprep.subr.mxu0 0.0
  %310 = vmatpush1.msra.mxu0 0.0
  %311 = vmatprep.subr.mxu0 0.0
  %312 = vmatpush1.msra.mxu0 0.0
  %313 = vmatprep.subr.mxu0 0.0
  %314 = vmatpush1.msra.mxu0 0.0
  %315 = vmatprep.subr.mxu0 0.0
  %316 = vmatpush1.msra.mxu0 0.0
  %317 = vmatprep.subr.mxu0 0.0
  %318 = vmatpush1.msra.mxu0 0.0
  %319 = vmatprep.subr.mxu0 0.0
  %320 = vmatpush1.msra.mxu0 0.0
  %321 = vmatprep.subr.mxu0 0.0
  %322 = vmatpush1.msra.mxu0 0.0
  %323 = vmatprep.subr.mxu0 0.0
  %324 = vmatpush1.msra.mxu0 0.0
  %325 = vmatprep.subr.mxu0 0.0
  %326 = vmatpush1.msra.mxu0 0.0
  %327 = vmatprep.subr.mxu0 0.0
  %328 = vmatpush1.msra.mxu0 0.0
  %329 = vmatprep.subr.mxu0 0.0
  %330 = vmatpush1.msra.mxu0 0.0
  %331 = vmatprep.subr.mxu0 0.0
  %332 = vmatpush1.msra.mxu0 0.0
  %333 = vmatprep.subr.mxu0 0.0
  %334 = vmatpush1.msra.mxu0 0.0
  %335 = vmatprep.subr.mxu0 0.0
  %336 = vmatpush1.msra.mxu0 0.0
  %337 = vmatprep.subr.mxu0 0.0
  %338 = vmatpush1.msra.mxu0 0.0
  %339 = vmatprep.subr.mxu0 0.0
  %340 = vmatpush1.msra.mxu0 0.0
  %341 = vmatprep.subr.mxu0 0.0
  %342 = vmatpush1.msra.mxu0 0.0
  %343 = vmatprep.subr.mxu0 0.0
  %344 = vmatpush1.msra.mxu0 0.0
  %345 = vmatprep.subr.mxu0 0.0
  %346 = vmatpush1.msra.mxu0 0.0
  %347 = vmatprep.subr.mxu0 0.0
  %348 = vmatpush1.msra.mxu0 0.0
  %349 = vmatprep.subr.mxu0 0.0
  %350 = vmatpush1.msra.mxu0 0.0
  %351 = vmatprep.mubr.f32.mxu0 0.0
  %352 = vmatmul.mubr.f32.gmra.mrb[0].mxu0 %v92
  %v353 = vpop.f32.mrb[0].mxu0
  %v354 = vadd.f32 %v88, %v353
  %v355 = vpop.f32.mrb[0].mxu0
  %356 = vmatprep.mubr.f32.mxu0 0.0
  %357 = vmatmul.mubr.f32.gmra.mrb[0].mxu0 %v95
  %v358 = vpop.f32.mrb[0].mxu0
  %v359 = vadd.f32 %v88, %v358
  %v360 = vpop.f32.mrb[0].mxu0
  %361 = vmatprep.mubr.f32.mxu0 0.0
  %362 = vmatmul.mubr.f32.gmra.mrb[0].mxu0 %v98
  %v363 = vpop.f32.mrb[0].mxu0
  %v364 = vadd.f32 %v88, %v363
  %v365 = vpop.f32.mrb[0].mxu0
  %366 = vmatprep.mubr.f32.mxu0 0.0
  %367 = vmatmul.mubr.f32.gmra.mrb[0].mxu0 %v101
  %v368 = vpop.f32.mrb[0].mxu0
  %v369 = vadd.f32 %v88, %v368
  %v370 = vpop.f32.mrb[0].mxu0
  %371 = vmatprep.mubr.f32.mxu0 0.0
  %372 = vmatmul.mubr.f32.gmra.mrb[0].mxu0 %v104
  %v373 = vpop.f32.mrb[0].mxu0
  %v374 = vadd.f32 %v88, %v373
  %v375 = vpop.f32.mrb[0].mxu0
  %376 = vmatprep.mubr.f32.mxu0 0.0
  %377 = vmatmul.mubr.f32.gmra.mrb[0].mxu0 %v107
  %v378 = vpop.f32.mrb[0].mxu0
  %v379 = vadd.f32 %v88, %v378
  %v380 = vpop.f32.mrb[0].mxu0
  %381 = vmatprep.mubr.f32.mxu0 0.0
  %382 = vmatmul.mubr.f32.gmra.mrb[0].mxu0 %v110
  %v383 = vpop.f32.mrb[0].mxu0
  %v384 = vadd.f32 %v88, %v383
  %v385 = vpop.f32.mrb[0].mxu0
  %386 = vmatprep.mubr.f32.mxu0 0.0
  %387 = vmatmul.mubr.f32.gmra.mrb[0].mxu0 %v113
  %v388 = vpop.f32.mrb[0].mxu0
  %v389 = vadd.f32 %v88, %v388
  %v390 = vpop.f32.mrb[0].mxu0
  %391 = vmatprep.mubr.f32.mxu0 0.0
  %392 = vmatmul.mubr.f32.gmra.mrb[0].mxu0 %v116
  %v393 = vpop.f32.mrb[0].mxu0
  %v394 = vadd.f32 %v88, %v393
  %v395 = vpop.f32.mrb[0].mxu0
  %396 = vmatprep.mubr.f32.mxu0 0.0
  %397 = vmatmul.mubr.f32.gmra.mrb[0].mxu0 %v119
  %v398 = vpop.f32.mrb[0].mxu0
  %v399 = vadd.f32 %v88, %v398
  %v400 = vpop.f32.mrb[0].mxu0
  %401 = vmatprep.mubr.f32.mxu0 0.0
  %402 = vmatmul.mubr.f32.gmra.mrb[0].mxu0 %v122
  %v403 = vpop.f32.mrb[0].mxu0
  %v404 = vadd.f32 %v88, %v403
  %v405 = vpop.f32.mrb[0].mxu0
  %406 = vmatprep.mubr.f32.mxu0 0.0
  %407 = vmatmul.mubr.f32.gmra.mrb[0].mxu0 %v125
  %v408 = vpop.f32.mrb[0].mxu0
  %v409 = vadd.f32 %v88, %v408
  %v410 = vpop.f32.mrb[0].mxu0
  %411 = vmatprep.mubr.f32.mxu0 0.0
  %412 = vmatmul.mubr.f32.gmra.mrb[0].mxu0 %v128
  %v413 = vpop.f32.mrb[0].mxu0
  %v414 = vadd.f32 %v88, %v413
  %v415 = vpop.f32.mrb[0].mxu0
  %416 = vmatprep.mubr.f32.mxu0 0.0
  %417 = vmatmul.mubr.f32.gmra.mrb[0].mxu0 %v131
  %v418 = vpop.f32.mrb[0].mxu0
  %v419 = vadd.f32 %v88, %v418
  %v420 = vpop.f32.mrb[0].mxu0
  %421 = vmatprep.mubr.f32.mxu0 0.0
  %422 = vmatmul.mubr.f32.gmra.mrb[0].mxu0 %v134
  %v423 = vpop.f32.mrb[0].mxu0
  %v424 = vadd.f32 %v88, %v423
  %v425 = vpop.f32.mrb[0].mxu0
  %426 = vmatprep.mubr.f32.mxu0 0.0
  %427 = vmatmul.mubr.f32.gmra.mrb[0].mxu0 %v137
  %v428 = vpop.f32.mrb[0].mxu0
  %v429 = vadd.f32 %v88, %v428
  %v430 = vpop.f32.mrb[0].mxu0
  %431 = vmatprep.mubr.f32.mxu0 0.0
  %432 = vmatmul.mubr.f32.gmra.mrb[0].mxu0 %v140
  %v433 = vpop.f32.mrb[0].mxu0
  %v434 = vadd.f32 %v88, %v433
  %v435 = vpop.f32.mrb[0].mxu0
  %436 = vmatprep.mubr.f32.mxu0 0.0
  %437 = vmatmul.mubr.f32.gmra.mrb[0].mxu0 %v143
  %v438 = vpop.f32.mrb[0].mxu0
  %v439 = vadd.f32 %v88, %v438
  %v440 = vpop.f32.mrb[0].mxu0
  %441 = vmatprep.mubr.f32.mxu0 0.0
  %442 = vmatmul.mubr.f32.gmra.mrb[0].mxu0 %v146
  %v443 = vpop.f32.mrb[0].mxu0
  %v444 = vadd.f32 %v88, %v443
  %v445 = vpop.f32.mrb[0].mxu0
  %446 = vmatprep.mubr.f32.mxu0 0.0
  %447 = vmatmul.mubr.f32.gmra.mrb[0].mxu0 %v149
  %v448 = vpop.f32.mrb[0].mxu0
  %v449 = vadd.f32 %v88, %v448
  %v450 = vpop.f32.mrb[0].mxu0
  %451 = vmatprep.mubr.f32.mxu0 0.0
  %452 = vmatmul.mubr.f32.gmra.mrb[0].mxu0 %v152
  %v453 = vpop.f32.mrb[0].mxu0
  %v454 = vadd.f32 %v88, %v453
  %v455 = vpop.f32.mrb[0].mxu0
  %456 = vmatprep.mubr.f32.mxu0 0.0
  %457 = vmatmul.mubr.f32.gmra.mrb[0].mxu0 %v155
  %v458 = vpop.f32.mrb[0].mxu0
  %v459 = vadd.f32 %v88, %v458
  %v460 = vpop.f32.mrb[0].mxu0
  %461 = vmatprep.mubr.f32.mxu0 0.0
  %462 = vmatmul.mubr.f32.gmra.mrb[0].mxu0 %v158
  %v463 = vpop.f32.mrb[0].mxu0
  %v464 = vadd.f32 %v88, %v463
  %v465 = vpop.f32.mrb[0].mxu0
  %466 = vmatprep.mubr.f32.mxu0 0.0
  %467 = vmatmul.mubr.f32.gmra.mrb[0].mxu0 %v161
  %v468 = vpop.f32.mrb[0].mxu0
  %v469 = vadd.f32 %v88, %v468
  %v470 = vpop.f32.mrb[0].mxu0
  %471 = vmatprep.mubr.f32.mxu0 0.0
  %472 = vmatmul.mubr.f32.gmra.mrb[0].mxu0 %v164
  %v473 = vpop.f32.mrb[0].mxu0
  %v474 = vadd.f32 %v88, %v473
  %v475 = vpop.f32.mrb[0].mxu0
  %476 = vmatprep.mubr.f32.mxu0 0.0
  %477 = vmatmul.mubr.f32.gmra.mrb[0].mxu0 %v167
  %v478 = vpop.f32.mrb[0].mxu0
  %v479 = vadd.f32 %v88, %v478
  %v480 = vpop.f32.mrb[0].mxu0
  %481 = vmatprep.mubr.f32.mxu0 0.0
  %482 = vmatmul.mubr.f32.gmra.mrb[0].mxu0 %v170
  %v483 = vpop.f32.mrb[0].mxu0
  %v484 = vadd.f32 %v88, %v483
  %v485 = vpop.f32.mrb[0].mxu0
  %486 = vmatprep.mubr.f32.mxu0 0.0
  %487 = vmatmul.mubr.f32.gmra.mrb[0].mxu0 %v173
  %v488 = vpop.f32.mrb[0].mxu0
  %v489 = vadd.f32 %v88, %v488
  %v490 = vpop.f32.mrb[0].mxu0
  %491 = vmatprep.mubr.f32.mxu0 0.0
  %492 = vmatmul.mubr.f32.gmra.mrb[0].mxu0 %v176
  %v493 = vpop.f32.mrb[0].mxu0
  %v494 = vadd.f32 %v88, %v493
  %v495 = vpop.f32.mrb[0].mxu0
  %496 = vmatprep.mubr.f32.mxu0 0.0
  %497 = vmatmul.mubr.f32.gmra.mrb[0].mxu0 %v179
  %v498 = vpop.f32.mrb[0].mxu0
  %v499 = vadd.f32 %v88, %v498
  %v500 = vpop.f32.mrb[0].mxu0
  %501 = vmatprep.mubr.f32.mxu0 0.0
  %502 = vmatmul.mubr.f32.gmra.mrb[0].mxu0 %v182
  %v503 = vpop.f32.mrb[0].mxu0
  %v504 = vadd.f32 %v88, %v503
  %v505 = vpop.f32.mrb[0].mxu0
  %506 = vmatprep.mubr.f32.mxu0 0.0
  %507 = vmatmul.mubr.f32.gmra.mrb[0].mxu0 %v185
  %v508 = vpop.f32.mrb[0].mxu0
  %v509 = vadd.f32 %v88, %v508
  %v510 = vpop.f32.mrb[0].mxu0
  %511 = vmatprep.mubr.f32.mxu0 0.0
  %512 = vmatmul.mubr.f32.gmra.mrb[0].mxu0 %v188
  %v513 = vpop.f32.mrb[0].mxu0
  %v514 = vadd.f32 %v88, %v513
  %v515 = vpop.f32.mrb[0].mxu0
  %516 = vmatprep.mubr.f32.mxu0 0.0
  %517 = vmatmul.mubr.f32.gmra.mrb[0].mxu0 %v191
  %v518 = vpop.f32.mrb[0].mxu0
  %v519 = vadd.f32 %v88, %v518
  %v520 = vpop.f32.mrb[0].mxu0
  %521 = vmatprep.mubr.f32.mxu0 0.0
  %522 = vmatmul.mubr.f32.gmra.mrb[0].mxu0 %v194
  %v523 = vpop.f32.mrb[0].mxu0
  %v524 = vadd.f32 %v88, %v523
  %v525 = vpop.f32.mrb[0].mxu0
  %526 = vmatprep.mubr.f32.mxu0 0.0
  %527 = vmatmul.mubr.f32.gmra.mrb[0].mxu0 %v197
  %v528 = vpop.f32.mrb[0].mxu0
  %v529 = vadd.f32 %v88, %v528
  %v530 = vpop.f32.mrb[0].mxu0
  %531 = vmatprep.mubr.f32.mxu0 0.0
  %532 = vmatmul.mubr.f32.gmra.mrb[0].mxu0 %v200
  %v533 = vpop.f32.mrb[0].mxu0
  %v534 = vadd.f32 %v88, %v533
  %v535 = vpop.f32.mrb[0].mxu0
  %536 = vmatprep.mubr.f32.mxu0 0.0
  %537 = vmatmul.mubr.f32.gmra.mrb[0].mxu0 %v203
  %v538 = vpop.f32.mrb[0].mxu0
  %v539 = vadd.f32 %v88, %v538
  %v540 = vpop.f32.mrb[0].mxu0
  %541 = vmatprep.mubr.f32.mxu0 0.0
  %542 = vmatmul.mubr.f32.gmra.mrb[0].mxu0 %v206
  %v543 = vpop.f32.mrb[0].mxu0
  %v544 = vadd.f32 %v88, %v543
  %v545 = vpop.f32.mrb[0].mxu0
  %546 = vmatprep.mubr.f32.mxu0 0.0
  %547 = vmatmul.mubr.f32.gmra.mrb[0].mxu0 %v209
  %v548 = vpop.f32.mrb[0].mxu0
  %v549 = vadd.f32 %v88, %v548
  %v550 = vpop.f32.mrb[0].mxu0
  %551 = vmatprep.mubr.f32.mxu0 0.0
  %552 = vmatmul.mubr.f32.gmra.mrb[0].mxu0 %v212
  %v553 = vpop.f32.mrb[0].mxu0
  %v554 = vadd.f32 %v88, %v553
  %v555 = vpop.f32.mrb[0].mxu0
  %556 = vmatprep.mubr.f32.mxu0 0.0
  %557 = vmatmul.mubr.f32.gmra.mrb[0].mxu0 %v215
  %v558 = vpop.f32.mrb[0].mxu0
  %v559 = vadd.f32 %v88, %v558
  %v560 = vpop.f32.mrb[0].mxu0
  %561 = vmatprep.mubr.f32.mxu0 0.0
  %562 = vmatmul.mubr.f32.gmra.mrb[0].mxu0 %v218
  %v563 = vpop.f32.mrb[0].mxu0
  %v564 = vadd.f32 %v88, %v563
  %v565 = vpop.f32.mrb[0].mxu0
  %566 = vmatprep.mubr.f32.mxu0 0.0
  %567 = vmatmul.mubr.f32.gmra.mrb[0].mxu0 %v221
  %v568 = vpop.f32.mrb[0].mxu0
  %v569 = vadd.f32 %v88, %v568
  %v570 = vpop.f32.mrb[0].mxu0
  %571 = vmatprep.mubr.f32.mxu0 0.0
  %572 = vmatmul.mubr.f32.gmra.mrb[0].mxu0 %v224
  %v573 = vpop.f32.mrb[0].mxu0
  %v574 = vadd.f32 %v88, %v573
  %v575 = vpop.f32.mrb[0].mxu0
  %576 = vmatprep.mubr.f32.mxu0 0.0
  %577 = vmatmul.mubr.f32.gmra.mrb[0].mxu0 %v227
  %v578 = vpop.f32.mrb[0].mxu0
  %v579 = vadd.f32 %v88, %v578
  %v580 = vpop.f32.mrb[0].mxu0
  %581 = vmatprep.mubr.f32.mxu0 0.0
  %582 = vmatmul.mubr.f32.gmra.mrb[0].mxu0 %v230
  %v583 = vpop.f32.mrb[0].mxu0
  %v584 = vadd.f32 %v88, %v583
  %v585 = vpop.f32.mrb[0].mxu0
  %586 = vmatprep.mubr.f32.mxu0 0.0
  %587 = vmatmul.mubr.f32.gmra.mrb[0].mxu0 %v233
  %v588 = vpop.f32.mrb[0].mxu0
  %v589 = vadd.f32 %v88, %v588
  %v590 = vpop.f32.mrb[0].mxu0
  %591 = vmatprep.mubr.f32.mxu0 0.0
  %592 = vmatmul.mubr.f32.gmra.mrb[0].mxu0 %v236
  %v593 = vpop.f32.mrb[0].mxu0
  %v594 = vadd.f32 %v88, %v593
  %v595 = vpop.f32.mrb[0].mxu0
  %596 = vmatprep.mubr.f32.mxu0 0.0
  %597 = vmatmul.mubr.f32.gmra.mrb[0].mxu0 %v239
  %v598 = vpop.f32.mrb[0].mxu0
  %v599 = vadd.f32 %v88, %v598
  %v600 = vpop.f32.mrb[0].mxu0
  %601 = vmatprep.mubr.f32.mxu0 0.0
  %602 = vmatmul.mubr.f32.gmra.mrb[0].mxu0 %v242
  %v603 = vpop.f32.mrb[0].mxu0
  %v604 = vadd.f32 %v88, %v603
  %v605 = vpop.f32.mrb[0].mxu0
  %606 = vmatprep.mubr.f32.mxu0 0.0
  %607 = vmatmul.mubr.f32.gmra.mrb[0].mxu0 %v245
  %v608 = vpop.f32.mrb[0].mxu0
  %v609 = vadd.f32 %v88, %v608
  %v610 = vpop.f32.mrb[0].mxu0
  %611 = vmatprep.mubr.f32.mxu0 0.0
  %612 = vmatmul.mubr.f32.gmra.mrb[0].mxu0 %v248
  %v613 = vpop.f32.mrb[0].mxu0
  %v614 = vadd.f32 %v88, %v613
  %v615 = vpop.f32.mrb[0].mxu0
  %616 = vmatprep.mubr.f32.mxu0 0.0
  %617 = vmatmul.mubr.f32.gmra.mrb[0].mxu0 %v251
  %v618 = vpop.f32.mrb[0].mxu0
  %v619 = vadd.f32 %v88, %v618
  %v620 = vpop.f32.mrb[0].mxu0
  %621 = vmatprep.mubr.f32.mxu0 0.0
  %622 = vmatmul.mubr.f32.gmra.mrb[0].mxu0 %v254
  %v623 = vpop.f32.mrb[0].mxu0
  %v624 = vadd.f32 %v88, %v623
  %v625 = vpop.f32.mrb[0].mxu0
  %626 = vmatprep.mubr.f32.mxu0 0.0
  %627 = vmatmul.mubr.f32.gmra.mrb[0].mxu0 %v257
  %v628 = vpop.f32.mrb[0].mxu0
  %v629 = vadd.f32 %v88, %v628
  %v630 = vpop.f32.mrb[0].mxu0
  %631 = vmatprep.mubr.f32.mxu0 0.0
  %632 = vmatmul.mubr.f32.gmra.mrb[0].mxu0 %v260
  %v633 = vpop.f32.mrb[0].mxu0
  %v634 = vadd.f32 %v88, %v633
  %v635 = vpop.f32.mrb[0].mxu0
  %636 = vmatprep.mubr.f32.mxu0 0.0
  %637 = vmatmul.mubr.f32.gmra.mrb[0].mxu0 %v263
  %v638 = vpop.f32.mrb[0].mxu0
  %v639 = vadd.f32 %v88, %v638
  %v640 = vpop.f32.mrb[0].mxu0
  %641 = vmatprep.mubr.f32.mxu0 0.0
  %642 = vmatmul.mubr.f32.gmra.mrb[0].mxu0 %v266
  %v643 = vpop.f32.mrb[0].mxu0
  %v644 = vadd.f32 %v88, %v643
  %v645 = vpop.f32.mrb[0].mxu0
  %646 = vmatprep.mubr.f32.mxu0 0.0
  %647 = vmatmul.mubr.f32.gmra.mrb[0].mxu0 %v269
  %v648 = vpop.f32.mrb[0].mxu0
  %v649 = vadd.f32 %v88, %v648
  %v650 = vpop.f32.mrb[0].mxu0
  %651 = vmatprep.mubr.f32.mxu0 0.0
  %652 = vmatmul.mubr.f32.gmra.mrb[0].mxu0 %v272
  %v653 = vpop.f32.mrb[0].mxu0
  %v654 = vadd.f32 %v88, %v653
  %v655 = vpop.f32.mrb[0].mxu0
  %656 = vmatprep.mubr.f32.mxu0 0.0
  %657 = vmatmul.mubr.f32.gmra.mrb[0].mxu0 %v275
  %v658 = vpop.f32.mrb[0].mxu0
  %v659 = vadd.f32 %v88, %v658
  %v660 = vpop.f32.mrb[0].mxu0
  %661 = vmatprep.mubr.f32.mxu0 0.0
  %662 = vmatmul.mubr.f32.gmra.mrb[0].mxu0 %v278
  %v663 = vpop.f32.mrb[0].mxu0
  %v664 = vadd.f32 %v88, %v663
  %v665 = vpop.f32.mrb[0].mxu0
  %666 = vmatprep.mubr.f32.mxu0 0.0
  %667 = vmatmul.mubr.f32.gmra.mrb[0].mxu0 %v281
  %v668 = vpop.f32.mrb[0].mxu0
  %v669 = vadd.f32 %v88, %v668
  %v670 = vpop.f32.mrb[0].mxu0
  %671 = vdwg.mxu0
  %672 = vst [vmem:[%s3] sm:$0xff] %v354
  %673 = vst [vmem:[%s3 + $0x8] sm:$0xff] %v359
  %674 = vst [vmem:[%s3 + $0x10] sm:$0xff] %v364
  %675 = vst [vmem:[%s3 + $0x18] sm:$0xff] %v369
  %676 = vst [vmem:[%s3 + $0x20] sm:$0xff] %v374
  %677 = vst [vmem:[%s3 + $0x28] sm:$0xff] %v379
  %678 = vst [vmem:[%s3 + $0x30] sm:$0xff] %v384
  %679 = vst [vmem:[%s3 + $0x38] sm:$0xff] %v389
  %680 = vst [vmem:[%s3 + $0x40] sm:$0xff] %v394
  %681 = vst [vmem:[%s3 + $0x48] sm:$0xff] %v399
  %682 = vst [vmem:[%s3 + $0x50] sm:$0xff] %v404
  %683 = vst [vmem:[%s3 + $0x58] sm:$0xff] %v409
  %684 = vst [vmem:[%s3 + $0x60] sm:$0xff] %v414
  %685 = vst [vmem:[%s3 + $0x68] sm:$0xff] %v419
  %686 = vst [vmem:[%s3 + $0x70] sm:$0xff] %v424
  %687 = vst [vmem:[%s3 + $0x78] sm:$0xff] %v429
  %688 = vst [vmem:[%s3 + $0x80] sm:$0xff] %v434
  %689 = vst [vmem:[%s3 + $0x88] sm:$0xff] %v439
  %690 = vst [vmem:[%s3 + $0x90] sm:$0xff] %v444
  %691 = vst [vmem:[%s3 + $0x98] sm:$0xff] %v449
  %692 = vst [vmem:[%s3 + $0xa0] sm:$0xff] %v454
  %693 = vst [vmem:[%s3 + $0xa8] sm:$0xff] %v459
  %694 = vst [vmem:[%s3 + $0xb0] sm:$0xff] %v464
  %695 = vst [vmem:[%s3 + $0xb8] sm:$0xff] %v469
  %696 = vst [vmem:[%s3 + $0xc0] sm:$0xff] %v474
  %697 = vst [vmem:[%s3 + $0xc8] sm:$0xff] %v479
  %698 = vst [vmem:[%s3 + $0xd0] sm:$0xff] %v484
  %699 = vst [vmem:[%s3 + $0xd8] sm:$0xff] %v489
  %700 = vst [vmem:[%s3 + $0xe0] sm:$0xff] %v494
  %701 = vst [vmem:[%s3 + $0xe8] sm:$0xff] %v499
  %702 = vst [vmem:[%s3 + $0xf0] sm:$0xff] %v504
  %703 = vst [vmem:[%s3 + $0xf8] sm:$0xff] %v509
  %704 = vst [vmem:[%s3 + $0x100] sm:$0xff] %v514
  %705 = vst [vmem:[%s3 + $0x108] sm:$0xff] %v519
  %706 = vst [vmem:[%s3 + $0x110] sm:$0xff] %v524
  %707 = vst [vmem:[%s3 + $0x118] sm:$0xff] %v529
  %708 = vst [vmem:[%s3 + $0x120] sm:$0xff] %v534
  %709 = vst [vmem:[%s3 + $0x128] sm:$0xff] %v539
  %710 = vst [vmem:[%s3 + $0x130] sm:$0xff] %v544
  %711 = vst [vmem:[%s3 + $0x138] sm:$0xff] %v549
  %712 = vst [vmem:[%s3 + $0x140] sm:$0xff] %v554
  %713 = vst [vmem:[%s3 + $0x148] sm:$0xff] %v559
  %714 = vst [vmem:[%s3 + $0x150] sm:$0xff] %v564
  %715 = vst [vmem:[%s3 + $0x158] sm:$0xff] %v569
  %716 = vst [vmem:[%s3 + $0x160] sm:$0xff] %v574
  %717 = vst [vmem:[%s3 + $0x168] sm:$0xff] %v579
  %718 = vst [vmem:[%s3 + $0x170] sm:$0xff] %v584
  %719 = vst [vmem:[%s3 + $0x178] sm:$0xff] %v589
  %720 = vst [vmem:[%s3 + $0x180] sm:$0xff] %v594
  %721 = vst [vmem:[%s3 + $0x188] sm:$0xff] %v599
  %722 = vst [vmem:[%s3 + $0x190] sm:$0xff] %v604
  %723 = vst [vmem:[%s3 + $0x198] sm:$0xff] %v609
  %724 = vst [vmem:[%s3 + $0x1a0] sm:$0xff] %v614
  %725 = vst [vmem:[%s3 + $0x1a8] sm:$0xff] %v619
  %726 = vst [vmem:[%s3 + $0x1b0] sm:$0xff] %v624
  %727 = vst [vmem:[%s3 + $0x1b8] sm:$0xff] %v629
  %728 = vst [vmem:[%s3 + $0x1c0] sm:$0xff] %v634
  %729 = vst [vmem:[%s3 + $0x1c8] sm:$0xff] %v639
  %730 = vst [vmem:[%s3 + $0x1d0] sm:$0xff] %v644
  %731 = vst [vmem:[%s3 + $0x1d8] sm:$0xff] %v649
  %732 = vst [vmem:[%s3 + $0x1e0] sm:$0xff] %v654
  %733 = vst [vmem:[%s3 + $0x1e8] sm:$0xff] %v659
  %734 = vst [vmem:[%s3 + $0x1f0] sm:$0xff] %v664
  %735 = vst [vmem:[%s3 + $0x1f8] sm:$0xff] %v669
  // Predicated region
  $region14: #{deform_conv2d_forward.2} parent=0 // pred_check
    _
  $region15: #{deform_conv2d_forward.2} parent=0 // pred_check_branch
    %737 = sbr.rel (0) target = $region17
  $region16: #{deform_conv2d_forward.2} parent=0 // pred_region
    _
  $region17: #{deform_conv2d_forward.2} parent=0 // pred_fallthru
    _
  // Predicated region
  $region18: #{deform_conv2d_forward.2} parent=0 // pred_check
    _
  $region19: #{deform_conv2d_forward.2} parent=0 // pred_check_branch
    %739 = sbr.rel (0) target = $region21
  $region20: #{deform_conv2d_forward.2} parent=0 // pred_region
    _
  $region21: #{deform_conv2d_forward.2} parent=0 // pred_fallthru
    _

// kernel: tile.0
$region0: #{tile.0}
  %s0 = inlined_call_operand.vmem [shape: bf16[4,36,8], index: 0, kind: input, shape index: {}]
  %s1 = inlined_call_operand.vmem [shape: bf16[144,8], index: 1, kind: output, shape index: {}]
  $region1: #{tile.0} parent=0
    #allocation0 [shape = 'u8[8192]{0}', space=vmem, size = 0x2000, scoped, tag = 'scoped mem for output reshape']
    #allocation1 [shape = 'u8[32768]{0}', space=vmem, size = 0x8000, scoped, tag = 'scoped mem for input reshape']
    %s3 = smul.u32 2, 2
    %s4 = sshllo.u32 0, %s3
    %s5 = smul.addr 2, 7
    %s6 = scalar_lea.vmem %s0, %s5
    %s7 = sshrl.u32 %s4, 1
    %s8 = sor.u32 %s4, %s7
    %s9 = sand.u32 %s8, 85
    %s10 = sshrl.u32 %s9, 1
    %s11 = sor.u32 %s9, %s10
    %s12 = sand.u32 51, %s11
    %s13 = sshrl.u32 %s12, 2
    %s14 = sor.u32 %s12, %s13
    %s15 = sand.u32 15, %s14
    %v16 = vld [vmem:[%s6] sm:%s15]
    %v17 = vunpack.c.l.bf16 %v16
    %v18 = vunpack.c.h.bf16 %v16
    %s19 = scalar_lea.vmem [#allocation1], 56
    %20 = vst [vmem:[%s19] sm:%s4] %v17
    %s21 = smul.addr 2, 6
    %s22 = scalar_lea.vmem %s0, %s21
    %s23 = sshrl.u32 %s4, 1
    %s24 = sor.u32 %s4, %s23
    %s25 = sand.u32 %s24, 85
    %s26 = sshrl.u32 %s25, 1
    %s27 = sor.u32 %s25, %s26
    %s28 = sand.u32 51, %s27
    %s29 = sshrl.u32 %s28, 2
    %s30 = sor.u32 %s28, %s29
    %s31 = sand.u32 15, %s30
    %v32 = vld [vmem:[%s22] sm:%s31]
    %v33 = vunpack.c.l.bf16 %v32
    %v34 = vunpack.c.h.bf16 %v32
    %s35 = scalar_lea.vmem [#allocation1], 48
    %36 = vst [vmem:[%s35] sm:%s4] %v33
    %s37 = smul.addr 2, 5
    %s38 = scalar_lea.vmem %s0, %s37
    %s39 = sshrl.u32 %s4, 1
    %s40 = sor.u32 %s4, %s39
    %s41 = sand.u32 %s40, 85
    %s42 = sshrl.u32 %s41, 1
    %s43 = sor.u32 %s41, %s42
    %s44 = sand.u32 51, %s43
    %s45 = sshrl.u32 %s44, 2
    %s46 = sor.u32 %s44, %s45
    %s47 = sand.u32 15, %s46
    %v48 = vld [vmem:[%s38] sm:%s47]
    %v49 = vunpack.c.l.bf16 %v48
    %v50 = vunpack.c.h.bf16 %v48
    %s51 = scalar_lea.vmem [#allocation1], 40
    %52 = vst [vmem:[%s51] sm:%s4] %v49
    %s53 = smul.addr 2, 4
    %s54 = scalar_lea.vmem %s0, %s53
    %s55 = sshrl.u32 %s4, 1
    %s56 = sor.u32 %s4, %s55
    %s57 = sand.u32 %s56, 85
    %s58 = sshrl.u32 %s57, 1
    %s59 = sor.u32 %s57, %s58
    %s60 = sand.u32 51, %s59
    %s61 = sshrl.u32 %s60, 2
    %s62 = sor.u32 %s60, %s61
    %s63 = sand.u32 15, %s62
    %v64 = vld [vmem:[%s54] sm:%s63]
    %v65 = vunpack.c.l.bf16 %v64
    %v66 = vunpack.c.h.bf16 %v64
    %s67 = scalar_lea.vmem [#allocation1], 32
    %68 = vst [vmem:[%s67] sm:%s4] %v65
    %s69 = smul.addr 2, 3
    %s70 = scalar_lea.vmem %s0, %s69
    %s71 = sshrl.u32 %s4, 1
    %s72 = sor.u32 %s4, %s71
    %s73 = sand.u32 %s72, 85
    %s74 = sshrl.u32 %s73, 1
    %s75 = sor.u32 %s73, %s74
    %s76 = sand.u32 51, %s75
    %s77 = sshrl.u32 %s76, 2
    %s78 = sor.u32 %s76, %s77
    %s79 = sand.u32 15, %s78
    %v80 = vld [vmem:[%s70] sm:%s79]
    %v81 = vunpack.c.l.bf16 %v80
    %v82 = vunpack.c.h.bf16 %v80
    %s83 = scalar_lea.vmem [#allocation1], 24
    %84 = vst [vmem:[%s83] sm:%s4] %v81
    %s85 = smul.addr 2, 2
    %s86 = scalar_lea.vmem %s0, %s85
    %s87 = sshrl.u32 %s4, 1
    %s88 = sor.u32 %s4, %s87
    %s89 = sand.u32 %s88, 85
    %s90 = sshrl.u32 %s89, 1
    %s91 = sor.u32 %s89, %s90
    %s92 = sand.u32 51, %s91
    %s93 = sshrl.u32 %s92, 2
    %s94 = sor.u32 %s92, %s93
    %s95 = sand.u32 15, %s94
    %v96 = vld [vmem:[%s86] sm:%s95]
    %v97 = vunpack.c.l.bf16 %v96
    %v98 = vunpack.c.h.bf16 %v96
    %s99 = scalar_lea.vmem [#allocation1], 16
    %100 = vst [vmem:[%s99] sm:%s4] %v97
    %s101 = scalar_lea.vmem %s0, 2
    %s102 = sshrl.u32 %s4, 1
    %s103 = sor.u32 %s4, %s102
    %s104 = sand.u32 %s103, 85
    %s105 = sshrl.u32 %s104, 1
    %s106 = sor.u32 %s104, %s105
    %s107 = sand.u32 51, %s106
    %s108 = sshrl.u32 %s107, 2
    %s109 = sor.u32 %s107, %s108
    %s110 = sand.u32 15, %s109
    %v111 = vld [vmem:[%s101] sm:%s110]
    %v112 = vunpack.c.l.bf16 %v111
    %v113 = vunpack.c.h.bf16 %v111
    %s114 = scalar_lea.vmem [#allocation1], 8
    %115 = vst [vmem:[%s114] sm:%s4] %v112
    %s116 = sshrl.u32 %s4, 1
    %s117 = sor.u32 %s4, %s116
    %s118 = sand.u32 %s117, 85
    %s119 = sshrl.u32 %s118, 1
    %s120 = sor.u32 %s118, %s119
    %s121 = sand.u32 51, %s120
    %s122 = sshrl.u32 %s121, 2
    %s123 = sor.u32 %s121, %s122
    %s124 = sand.u32 15, %s123
    %v125 = vld [vmem:[%s0] sm:%s124]
    %v126 = vunpack.c.l.bf16 %v125
    %v127 = vunpack.c.h.bf16 %v125
    %128 = vst [vmem:[#allocation1] sm:%s4] %v126
    %v129 = vld [vmem:[#allocation1] ss:$8 sm:$0xf]
    %v130 = vld [vmem:[#allocation1] ss:$8 sm:$0xf0]
    %vm131 = vcmask 1047556
    %v132 = vsel %vm131, %v130, %v129
    %vm133 = vcmask 293888
    %134 = vst.msk [vmem:[#allocation0] sm:$0xff] %vm133, %v132
    %s135 = scalar_lea.vmem [#allocation1], 3
    %v136 = vld [vmem:[%s135] ss:$8 sm:$0xf]
    %s137 = scalar_lea.vmem [#allocation1], 3
    %v138 = vld [vmem:[%s137] ss:$8 sm:$0xf0]
    %vm139 = vcmask 1047556
    %v140 = vsel %vm139, %v138, %v136
    %s141 = scalar_lea.vmem [#allocation1], 3
    %v142 = vld [vmem:[%s141] ss:$8 sm:$0xf]
    %s143 = scalar_lea.vmem [#allocation1], 3
    %v144 = vld [vmem:[%s143] ss:$8 sm:$0xf0]
    %vm145 = vcmask 1047556
    %v146 = vsel %vm145, %v144, %v142
    %vm147 = vcmask 162816
    %v148 = vsel %vm147, %v146, %v140
    %149 = vrot.lane.b32.xlu0 %v148, 108
    %v150 = vpop.permute.xlu0 %149
    %vm151 = vcmask 130048
    %s152 = scalar_lea.vmem [#allocation0], 8
    %153 = vst.msk [vmem:[%s152] sm:$0xff] %vm151, %v150
    %vm154 = vcmask 1048416
    %155 = vst.msk [vmem:[#allocation0] sm:$0xff] %vm154, %v150
    %s156 = scalar_lea.vmem [#allocation1], 2
    %v157 = vld [vmem:[%s156] ss:$8 sm:$0xf]
    %s158 = scalar_lea.vmem [#allocation1], 2
    %v159 = vld [vmem:[%s158] ss:$8 sm:$0xf0]
    %vm160 = vcmask 1047556
    %v161 = vsel %vm160, %v159, %v157
    %162 = vrot.lane.b32.xlu0 %v161, 72
    %v163 = vpop.permute.xlu0 %162
    %vm164 = vcmask 884288
    %165 = vst.msk [vmem:[#allocation0] sm:$0xff] %vm164, %v163
    %s166 = scalar_lea.vmem [#allocation1], 1
    %v167 = vld [vmem:[%s166] ss:$8 sm:$0xf]
    %s168 = scalar_lea.vmem [#allocation1], 1
    %v169 = vld [vmem:[%s168] ss:$8 sm:$0xf0]
    %vm170 = vcmask 1047556
    %v171 = vsel %vm170, %v169, %v167
    %172 = vrot.lane.b32.xlu0 %v171, 36
    %v173 = vpop.permute.xlu0 %172
    %vm174 = vcmask 589088
    %175 = vst.msk [vmem:[#allocation0] sm:$0xff] %vm174, %v173
    %s177 = smul.u32 4, 2
    %s178 = sshllo.u32 0, %s177
    %s179 = sshrl.u32 %s177, 1
    %v180 = vld [vmem:[#allocation0] sm:%s178]
    %v181 = vpack.c.bf16 0.0, %v180
    %s182 = sshllo.u32 0, %s179
    %183 = vst [vmem:[%s1] sm:%s182] %v181
    %s184 = scalar_lea.vmem [#allocation0], 8
    %v185 = vld [vmem:[%s184] sm:%s178]
    %v186 = vpack.c.bf16 0.0, %v185
    %s187 = sshllo.u32 0, %s179
    %s188 = scalar_lea.vmem %s1, 4
    %189 = vst [vmem:[%s188] sm:%s187] %v186

// kernel: deform_conv2d_forward.3
$region0: #{deform_conv2d_forward.3}
  #allocation0 [shape = 'u32[]', space=smem, size = 0x4, offset = 0x4, fixed_abs, tag = 'smem constant byte address 0x4 - core index']
  #allocation1 [shape = 'u32[144,128]{1,0:T(1,128)}', space=vmem, size = 0x12000, scoped, tag = 'internal scratch']
  %s0 = inlined_call_operand.vmem [shape: bf16[2,256,144], index: 0, kind: input, shape index: {}]
  %s1 = inlined_call_operand.vmem [shape: bf16[2,256,36], index: 1, kind: input, shape index: {}]
  %s2 = inlined_call_operand.vmem [shape: bf16[36,144], index: 2, kind: input, shape index: {}]
  %s3 = inlined_call_operand.vmem [shape: bf16[144,128], index: 3, kind: input, shape index: {}]
  %s4 = inlined_call_operand.vmem [shape: f32[2,256,128], index: 4, kind: output, shape index: {}]
  %s5 = sld [smem:[#allocation0]]
  $region49: #{deform_conv2d_forward.3} parent=0
    _
  %s7 = ssub.s32 1, %s5
  %s8 = scalar_select 0, %s7, %s5
  loop: start=0, step=1, limit=4
  $region2: #{deform_conv2d_forward.3} parent=0 // loop_pre_header
    _
  $region3: #{deform_conv2d_forward.3} parent=0 // loop_header
    %s10 = sphi 0, %s14
    %p11 = scmp.ge.s32.totalorder %s10, 4
    %s17 = sphi 0, %s29
    %s18 = sphi 0, %s25
    %s19 = sphi 0, %s17
    %s20 = sphi 0, %s18
    %s21 = sphi 0, %s19
    %s22 = sphi 0, %s20
    %s34 = sphi 0, %s36
    %s37 = sphi 0, %s34
    %s38 = sphi 0, %s37
    %s54 = sphi 0, %s38
    %s62 = sphi 0, %s64
    %s65 = sphi 0, %s62
    %s66 = sphi 0, %s65
    %s82 = sphi 0, %s66
    %s86 = sphi 0, %s86
    %s88 = sphi 0, %s86
    %s89 = sphi 0, %s88
    %s103 = sphi 0, %s89
    %s107 = sphi 0, %s107
    %s109 = sphi 0, %s107
    %s110 = sphi 0, %s109
    %s124 = sphi 0, %s110
    %s132 = sphi 0, %s134
    %s135 = sphi 0, %s132
    %s136 = sphi 0, %s135
    %s152 = sphi 0, %s136
  $region4: #{deform_conv2d_forward.3} parent=0 // loop_header_branch
    %13 = sbr.rel (%p11) target = $region8
  $region5: #{deform_conv2d_forward.3} parent=0 // loop_body
    %s15 = ssub.s32 %s10, 1
    %s16 = ssub.s32 %s10, 2
    %s23 = sadd.s32 1, %s18
    %p24 = scmp.ge.s32.totalorder %s23, 2
    %s25 = scalar_select %p24, 0, %s23
    %s26 = sadd.s32 1, %s17
    %s27 = scalar_select %p24, %s26, %s17
    %p28 = scmp.ge.s32.totalorder %s27, 1
    %s29 = scalar_select %p28, 0, %s27
    %s30 = ssub.s32 %s18, %s25
    %s31 = ssub.s32 %s17, %s29
    %s32 = sor.u32 %s30, %s31
    %p33 = scmp.eq.s32.totalorder %s32, 0
    %s35 = sadd.s32 %s34, 1
    %s36 = scalar_select %p33, %s34, %s35
    %p39 = pneg %p33
    %p40 = scmp.eq.s32.totalorder %s10, 1
    %p41 = por %p39, %p40
    %p42 = scmp.ne.s32.totalorder %s34, %s37
    %p43 = scmp.eq.s32.totalorder %s10, 0
    %p44 = por %p42, %p43
    %p45 = scmp.ne.s32.totalorder %s34, %s37
    %p46 = scmp.eq.s32.totalorder %s15, 1
    %p47 = por %p45, %p46
    %p48 = scmp.ne.s32.totalorder %s37, %s38
    %p49 = scmp.eq.s32.totalorder %s15, 0
    %p50 = por %p48, %p49
    %p51 = scmp.ne.s32.totalorder %s37, %s38
    %p52 = scmp.eq.s32.totalorder %s16, 1
    %p53 = por %p51, %p52
    %p55 = scmp.ne.s32.totalorder %s38, %s54
    %p56 = scmp.eq.s32.totalorder %s16, 0
    %p57 = por %p55, %p56
    %s58 = ssub.s32 %s18, %s25
    %s59 = ssub.s32 %s17, %s29
    %s60 = sor.u32 %s58, %s59
    %p61 = scmp.eq.s32.totalorder %s60, 0
    %s63 = sadd.s32 %s62, 1
    %s64 = scalar_select %p61, %s62, %s63
    %p67 = pneg %p61
    %p68 = scmp.eq.s32.totalorder %s10, 1
    %p69 = por %p67, %p68
    %p70 = scmp.ne.s32.totalorder %s62, %s65
    %p71 = scmp.eq.s32.totalorder %s10, 0
    %p72 = por %p70, %p71
    %p73 = scmp.ne.s32.totalorder %s62, %s65
    %p74 = scmp.eq.s32.totalorder %s15, 1
    %p75 = por %p73, %p74
    %p76 = scmp.ne.s32.totalorder %s65, %s66
    %p77 = scmp.eq.s32.totalorder %s15, 0
    %p78 = por %p76, %p77
    %p79 = scmp.ne.s32.totalorder %s65, %s66
    %p80 = scmp.eq.s32.totalorder %s16, 1
    %p81 = por %p79, %p80
    %p83 = scmp.ne.s32.totalorder %s66, %s82
    %p84 = scmp.eq.s32.totalorder %s16, 0
    %p85 = por %p83, %p84
    %s87 = sadd.s32 %s86, 1
    %p90 = scmp.eq.s32.totalorder %s10, 1
    %p91 = scmp.ne.s32.totalorder %s86, %s88
    %p92 = scmp.eq.s32.totalorder %s10, 0
    %p93 = por %p91, %p92
    %p94 = scmp.ne.s32.totalorder %s86, %s88
    %p95 = scmp.eq.s32.totalorder %s15, 1
    %p96 = por %p94, %p95
    %p97 = scmp.ne.s32.totalorder %s88, %s89
    %p98 = scmp.eq.s32.totalorder %s15, 0
    %p99 = por %p97, %p98
    %p100 = scmp.ne.s32.totalorder %s88, %s89
    %p101 = scmp.eq.s32.totalorder %s16, 1
    %p102 = por %p100, %p101
    %p104 = scmp.ne.s32.totalorder %s89, %s103
    %p105 = scmp.eq.s32.totalorder %s16, 0
    %p106 = por %p104, %p105
    %s108 = sadd.s32 %s107, 1
    %p111 = scmp.eq.s32.totalorder %s10, 1
    %p112 = scmp.ne.s32.totalorder %s107, %s109
    %p113 = scmp.eq.s32.totalorder %s10, 0
    %p114 = por %p112, %p113
    %p115 = scmp.ne.s32.totalorder %s107, %s109
    %p116 = scmp.eq.s32.totalorder %s15, 1
    %p117 = por %p115, %p116
    %p118 = scmp.ne.s32.totalorder %s109, %s110
    %p119 = scmp.eq.s32.totalorder %s15, 0
    %p120 = por %p118, %p119
    %p121 = scmp.ne.s32.totalorder %s109, %s110
    %p122 = scmp.eq.s32.totalorder %s16, 1
    %p123 = por %p121, %p122
    %p125 = scmp.ne.s32.totalorder %s110, %s124
    %p126 = scmp.eq.s32.totalorder %s16, 0
    %p127 = por %p125, %p126
    %s128 = ssub.s32 %s18, %s25
    %s129 = ssub.s32 %s17, %s29
    %s130 = sor.u32 %s128, %s129
    %p131 = scmp.eq.s32.totalorder %s130, 0
    %s133 = sadd.s32 %s132, 1
    %s134 = scalar_select %p131, %s132, %s133
    %p137 = pneg %p131
    %p138 = scmp.eq.s32.totalorder %s10, 1
    %p139 = por %p137, %p138
    %p140 = scmp.ne.s32.totalorder %s132, %s135
    %p141 = scmp.eq.s32.totalorder %s10, 0
    %p142 = por %p140, %p141
    %p143 = scmp.ne.s32.totalorder %s132, %s135
    %p144 = scmp.eq.s32.totalorder %s15, 1
    %p145 = por %p143, %p144
    %p146 = scmp.ne.s32.totalorder %s135, %s136
    %p147 = scmp.eq.s32.totalorder %s15, 0
    %p148 = por %p146, %p147
    %p149 = scmp.ne.s32.totalorder %s135, %s136
    %p150 = scmp.eq.s32.totalorder %s16, 1
    %p151 = por %p149, %p150
    %p153 = scmp.ne.s32.totalorder %s136, %s152
    %p154 = scmp.eq.s32.totalorder %s16, 0
    %p155 = por %p153, %p154
    %p156 = scmp.le.s32.totalorder 1, %s10
    %p157 = scmp.lt.s32.totalorder %s10, 3
    %p158 = pnand %p156, %p157
    %p159 = pneg %p158
    // Predicated region
    $region9: #{deform_conv2d_forward.3} parent=5 // pred_check
      _
    $region10: #{deform_conv2d_forward.3} parent=5 // pred_check_branch
      %161 = sbr.rel (%p158) target = $region12
    $region11: #{deform_conv2d_forward.3} parent=5 // pred_region
      %s162 = ssub.s32 %s10, 1
      // Predicated region
      $region13: #{deform_conv2d_forward.3} parent=11 // pred_check
        %p163 = pneg %p99
      $region14: #{deform_conv2d_forward.3} parent=11 // pred_check_branch
        %165 = sbr.rel (%p163) target = $region16
      $region15: #{deform_conv2d_forward.3} parent=11 // pred_region
        _
      $region16: #{deform_conv2d_forward.3} parent=11 // pred_fallthru
        _
      // Predicated region
      $region17: #{deform_conv2d_forward.3} parent=11 // pred_check
        %p166 = pneg %p120
      $region18: #{deform_conv2d_forward.3} parent=11 // pred_check_branch
        %168 = sbr.rel (%p166) target = $region20
      $region19: #{deform_conv2d_forward.3} parent=11 // pred_region
        _
      $region20: #{deform_conv2d_forward.3} parent=11 // pred_fallthru
        _
    $region12: #{deform_conv2d_forward.3} parent=5 // pred_fallthru
      _
    %p169 = scmp.lt.s32.totalorder %s10, 2
    // Predicated region
    $region21: #{deform_conv2d_forward.3} parent=5 // pred_check
      %p170 = pneg %p169
    $region22: #{deform_conv2d_forward.3} parent=5 // pred_check_branch
      %172 = sbr.rel (%p170) target = $region24
    $region23: #{deform_conv2d_forward.3} parent=5 // pred_region
      // Predicated region
      $region25: #{deform_conv2d_forward.3} parent=23 // pred_check
        %p173 = pneg %p44
      $region26: #{deform_conv2d_forward.3} parent=23 // pred_check_branch
        %175 = sbr.rel (%p173) target = $region28
      $region27: #{deform_conv2d_forward.3} parent=23 // pred_region
        %s176 = smul.u32 32, %s17
        %p177 = scmp.lt.s32.totalorder %s18, 1
        %s178 = scalar_select %p177, %s18, 1
        %p179 = scmp.lt.s32.totalorder %s176, 31
        %s180 = scalar_select %p179, %s176, 31
        %s181 = smul.addr %s180, 2
        %s182 = smul.addr %s178, 64
        %s183 = sadd.s32 %s181, %s182
        %s184 = smul.addr %s183, 4
        %s185 = scalar_lea.vmem %s0, %s184
        %s186 = smul.u32 32, %s17
      $region28: #{deform_conv2d_forward.3} parent=23 // pred_fallthru
        _
      // Predicated region
      $region29: #{deform_conv2d_forward.3} parent=23 // pred_check
        %p187 = pneg %p72
      $region30: #{deform_conv2d_forward.3} parent=23 // pred_check_branch
        %189 = sbr.rel (%p187) target = $region32
      $region31: #{deform_conv2d_forward.3} parent=23 // pred_region
        %s190 = smul.u32 32, %s17
        %p191 = scmp.lt.s32.totalorder %s18, 1
        %s192 = scalar_select %p191, %s18, 1
        %p193 = scmp.lt.s32.totalorder %s190, 31
        %s194 = scalar_select %p193, %s190, 31
        %s195 = smul.addr %s192, 32
        %s196 = sadd.s32 %s194, %s195
        %s197 = smul.addr %s196, 4
        %s198 = scalar_lea.vmem %s1, %s197
        %s199 = smul.u32 32, %s17
      $region32: #{deform_conv2d_forward.3} parent=23 // pred_fallthru
        _
    $region24: #{deform_conv2d_forward.3} parent=5 // pred_fallthru
      _
    %p200 = scmp.le.s32.totalorder 1, %s10
    %p201 = scmp.lt.s32.totalorder %s10, 3
    %p202 = pnand %p200, %p201
    %p203 = pneg %p202
    // Predicated region
    $region33: #{deform_conv2d_forward.3} parent=5 // pred_check
      _
    $region34: #{deform_conv2d_forward.3} parent=5 // pred_check_branch
      %205 = sbr.rel (%p202) target = $region36
    $region35: #{deform_conv2d_forward.3} parent=5 // pred_region
      %s206 = ssub.s32 %s10, 1
      %s207 = smul.u32 32, %s19
      %p208 = scmp.lt.s32.totalorder %s20, 1
      %s209 = scalar_select %p208, %s20, 1
      %p210 = scmp.lt.s32.totalorder %s207, 31
      %s211 = scalar_select %p210, %s207, 31
      %s212 = smul.addr %s211, 2
      %s213 = smul.addr %s209, 64
      %s214 = sadd.s32 %s212, %s213
      %s215 = smul.addr %s214, 4
      %s216 = scalar_lea.vmem %s0, %s215
      %p217 = pneg %p50
      %p218 = pneg %p47
      %s219 = smul.u32 32, %s19
      %p220 = scmp.lt.s32.totalorder %s20, 1
      %s221 = scalar_select %p220, %s20, 1
      %p222 = scmp.lt.s32.totalorder %s219, 31
      %s223 = scalar_select %p222, %s219, 31
      %s224 = smul.addr %s221, 32
      %s225 = sadd.s32 %s223, %s224
      %s226 = smul.addr %s225, 4
      %s227 = scalar_lea.vmem %s1, %s226
      %p228 = pneg %p78
      %p229 = pneg %p75
      %p230 = pneg %p99
      %p231 = pneg %p96
      %p232 = pneg %p120
      %p233 = pneg %p117
      %p234 = pneg %p148
      %p235 = pneg %p145
      %s236 = smul.u32 32, %s19
      %p237 = scmp.lt.s32.totalorder %s20, 1
      %s238 = scalar_select %p237, %s20, 1
      %p239 = scmp.lt.s32.totalorder %s236, 31
      %s240 = scalar_select %p239, %s236, 31
      %s241 = smul.addr %s238, 32
      %s242 = sadd.s32 %s240, %s241
      %s243 = smul.addr %s242, 8
      %s244 = scalar_lea.vmem %s4, %s243
      %s245 = smul.u32 32, %s19
      %p246 = scmp.lt.s32.totalorder %s20, 1
      %s247 = scalar_select %p246, %s20, 1
      %p248 = scmp.lt.s32.totalorder %s245, 31
      %s249 = scalar_select %p248, %s245, 31
      %s250 = smul.addr %s249, 2
      %s251 = smul.addr %s247, 64
      %s252 = sadd.s32 %s250, %s251
      %s253 = smul.addr %s252, 4
      %s254 = scalar_lea.vmem %s0, %s253
      %s255 = smul.u32 32, %s19
      %s256 = smul.u32 32, %s19
      %p257 = scmp.lt.s32.totalorder %s20, 1
      %s258 = scalar_select %p257, %s20, 1
      %p259 = scmp.lt.s32.totalorder %s256, 31
      %s260 = scalar_select %p259, %s256, 31
      %s261 = smul.addr %s258, 32
      %s262 = sadd.s32 %s260, %s261
      %s263 = smul.addr %s262, 4
      %s264 = scalar_lea.vmem %s1, %s263
      %s265 = smul.u32 32, %s19
      %s266 = smul.u32 32, %s19
      %p267 = scmp.lt.s32.totalorder %s20, 1
      %s268 = scalar_select %p267, %s20, 1
      %p269 = scmp.lt.s32.totalorder %s266, 31
      %s270 = scalar_select %p269, %s266, 31
      %s271 = smul.addr %s268, 32
      %s272 = sadd.s32 %s270, %s271
      %s273 = smul.addr %s272, 8
      %s274 = scalar_lea.vmem %s4, %s273
      %s275 = smul.u32 32, %s19
      %v277 = vld [vmem:[%s264] sm:$0xf]
      %v278 = vld [vmem:[%s264 + $0x4] sm:$0xf]
      %v279 = vld [vmem:[%s264 + $0x8] sm:$0xf]
      %v280 = vld [vmem:[%s264 + $0xc] sm:$0xf]
      %v281 = vld [vmem:[%s264 + $0x10] sm:$0xf]
      %v282 = vld [vmem:[%s264 + $0x14] sm:$0xf]
      %v283 = vld [vmem:[%s264 + $0x18] sm:$0xf]
      %v284 = vld [vmem:[%s264 + $0x1c] sm:$0xf]
      %v285 = vld [vmem:[%s264 + $0x20] sm:$0xf]
      %v286 = vld [vmem:[%s264 + $0x24] sm:$0xf]
      %v287 = vld [vmem:[%s264 + $0x28] sm:$0xf]
      %v288 = vld [vmem:[%s264 + $0x2c] sm:$0xf]
      %v289 = vld [vmem:[%s264 + $0x30] sm:$0xf]
      %v290 = vld [vmem:[%s264 + $0x34] sm:$0xf]
      %v291 = vld [vmem:[%s264 + $0x38] sm:$0xf]
      %v292 = vld [vmem:[%s264 + $0x3c] sm:$0xf]
      %v293 = vld [vmem:[%s264 + $0x40] sm:$0xf]
      %v294 = vld [vmem:[%s264 + $0x44] sm:$0xf]
      %v295 = vld [vmem:[%s264 + $0x48] sm:$0xf]
      %v296 = vld [vmem:[%s264 + $0x4c] sm:$0xf]
      %v297 = vld [vmem:[%s264 + $0x50] sm:$0xf]
      %v298 = vld [vmem:[%s264 + $0x54] sm:$0xf]
      %v299 = vld [vmem:[%s264 + $0x58] sm:$0xf]
      %v300 = vld [vmem:[%s264 + $0x5c] sm:$0xf]
      %v301 = vld [vmem:[%s264 + $0x60] sm:$0xf]
      %v302 = vld [vmem:[%s264 + $0x64] sm:$0xf]
      %v303 = vld [vmem:[%s264 + $0x68] sm:$0xf]
      %v304 = vld [vmem:[%s264 + $0x6c] sm:$0xf]
      %v305 = vld [vmem:[%s264 + $0x70] sm:$0xf]
      %v306 = vld [vmem:[%s264 + $0x74] sm:$0xf]
      %v307 = vld [vmem:[%s264 + $0x78] sm:$0xf]
      %v308 = vld [vmem:[%s264 + $0x7c] sm:$0xf]
      %v309 = vld [vmem:[%s2] sm:$0xff]
      %v310 = vld [vmem:[%s2 + $0x8] sm:$0xff]
      %v311 = vld [vmem:[%s2 + $0x10] sm:$0xff]
      %v312 = vld [vmem:[%s2 + $0x18] sm:$0xff]
      %v313 = vld [vmem:[%s2 + $0x20] sm:$0x33]
      %v346 = vunpack.c.l.b16 %v277
      %v347 = vunpack.c.l.b16 %v278
      %v348 = vunpack.c.l.b16 %v279
      %v349 = vunpack.c.l.b16 %v280
      %v350 = vunpack.c.l.b16 %v281
      %v351 = vunpack.c.l.b16 %v282
      %v352 = vunpack.c.l.b16 %v283
      %v353 = vunpack.c.l.b16 %v284
      %v354 = vunpack.c.l.b16 %v285
      %v355 = vunpack.c.l.b16 %v286
      %v356 = vunpack.c.l.b16 %v287
      %v357 = vunpack.c.l.b16 %v288
      %v358 = vunpack.c.l.b16 %v289
      %v359 = vunpack.c.l.b16 %v290
      %v360 = vunpack.c.l.b16 %v291
      %v361 = vunpack.c.l.b16 %v292
      %v362 = vunpack.c.l.b16 %v293
      %v363 = vunpack.c.l.b16 %v294
      %v364 = vunpack.c.l.b16 %v295
      %v365 = vunpack.c.l.b16 %v296
      %v366 = vunpack.c.l.b16 %v297
      %v367 = vunpack.c.l.b16 %v298
      %v368 = vunpack.c.l.b16 %v299
      %v369 = vunpack.c.l.b16 %v300
      %v370 = vunpack.c.l.b16 %v301
      %v371 = vunpack.c.l.b16 %v302
      %v372 = vunpack.c.l.b16 %v303
      %v373 = vunpack.c.l.b16 %v304
      %v374 = vunpack.c.l.b16 %v305
      %v375 = vunpack.c.l.b16 %v306
      %v376 = vunpack.c.l.b16 %v307
      %v377 = vunpack.c.l.b16 %v308
      %v378 = vpack.c.b16 %v347, %v346
      %v379 = vpack.c.b16 %v349, %v348
      %v380 = vpack.c.b16 %v351, %v350
      %v381 = vpack.c.b16 %v353, %v352
      %v382 = vpack.c.b16 %v355, %v354
      %v383 = vpack.c.b16 %v357, %v356
      %v384 = vpack.c.b16 %v359, %v358
      %v385 = vpack.c.b16 %v361, %v360
      %v386 = vpack.c.b16 %v363, %v362
      %v387 = vpack.c.b16 %v365, %v364
      %v388 = vpack.c.b16 %v367, %v366
      %v389 = vpack.c.b16 %v369, %v368
      %v390 = vpack.c.b16 %v371, %v370
      %v391 = vpack.c.b16 %v373, %v372
      %v392 = vpack.c.b16 %v375, %v374
      %v393 = vpack.c.b16 %v377, %v376
      %v399 = vunpack.c.l.b16 %v309
      %v400 = vunpack.c.h.b16 %v309
      %v401 = vunpack.c.l.b16 %v310
      %v402 = vunpack.c.h.b16 %v310
      %v403 = vunpack.c.l.b16 %v311
      %v404 = vunpack.c.h.b16 %v311
      %v405 = vunpack.c.l.b16 %v312
      %v406 = vunpack.c.h.b16 %v312
      %v407 = vunpack.c.l.b16 %v313
      %v408 = vunpack.c.h.b16 %v313
      %v409 = vpack.c.b16 %v401, %v399
      %v410 = vpack.c.b16 %v402, %v400
      %v411 = vpack.c.b16 %v405, %v403
      %v412 = vpack.c.b16 %v406, %v404
      %v413 = vpack.c.b16 %v407, %v407
      %v414 = vpack.c.b16 %v408, %v408
      %vm419 = vcmask 293888
      %v421 = vsel %vm419, %v378, 0
      %v424 = vsel %vm419, %v379, 0
      %v427 = vsel %vm419, %v380, 0
      %v430 = vsel %vm419, %v381, 0
      %v433 = vsel %vm419, %v382, 0
      %v436 = vsel %vm419, %v383, 0
      %v439 = vsel %vm419, %v384, 0
      %v442 = vsel %vm419, %v385, 0
      %v445 = vsel %vm419, %v386, 0
      %v448 = vsel %vm419, %v387, 0
      %v451 = vsel %vm419, %v388, 0
      %v454 = vsel %vm419, %v389, 0
      %v457 = vsel %vm419, %v390, 0
      %v460 = vsel %vm419, %v391, 0
      %v463 = vsel %vm419, %v392, 0
      %v466 = vsel %vm419, %v393, 0
      %vm468 = vcmask 1041408
      %v470 = vsel %vm468, %v413, 0
      %v473 = vsel %vm468, %v414, 0
      %475 = vmatprep.subr.bf16.mxu0 %v410
      %476 = vmatpush1.bf16.msra.mxu0 %v409
      %477 = vmatprep.subr.bf16.mxu0 %v412
      %478 = vmatpush1.bf16.msra.mxu0 %v411
      %479 = vmatprep.subr.bf16.mxu0 %v473
      %480 = vmatpush1.bf16.msra.mxu0 %v470
      %481 = vmatprep.subr.bf16.mxu0 0
      %482 = vmatpush1.bf16.msra.mxu0 0
      %483 = vmatprep.subr.bf16.mxu0 0
      %484 = vmatpush1.bf16.msra.mxu0 0
      %485 = vmatprep.subr.bf16.mxu0 0
      %486 = vmatpush1.bf16.msra.mxu0 0
      %487 = vmatprep.subr.bf16.mxu0 0
      %488 = vmatpush1.bf16.msra.mxu0 0
      %489 = vmatprep.subr.bf16.mxu0 0
      %490 = vmatpush1.bf16.msra.mxu0 0
      %491 = vmatprep.subr.bf16.mxu0 0
      %492 = vmatpush1.bf16.msra.mxu0 0
      %493 = vmatprep.subr.bf16.mxu0 0
      %494 = vmatpush1.bf16.msra.mxu0 0
      %495 = vmatprep.subr.bf16.mxu0 0
      %496 = vmatpush1.bf16.msra.mxu0 0
      %497 = vmatprep.subr.bf16.mxu0 0
      %498 = vmatpush1.bf16.msra.mxu0 0
      %499 = vmatprep.subr.bf16.mxu0 0
      %500 = vmatpush1.bf16.msra.mxu0 0
      %501 = vmatprep.subr.bf16.mxu0 0
      %502 = vmatpush1.bf16.msra.mxu0 0
      %503 = vmatprep.subr.bf16.mxu0 0
      %504 = vmatpush1.bf16.msra.mxu0 0
      %505 = vmatprep.subr.bf16.mxu0 0
      %506 = vmatpush1.bf16.msra.mxu0 0
      %507 = vmatprep.mubr.bf16.mxu0 0
      %508 = vmatmul.mubr.bf16.gmra.mrb[0].mxu0 %v421
      %v509 = vpop.f32.mrb[0].mxu0
      %v510 = vadd.f32 0.0, %v509
      %v511 = vpop.f32.mrb[0].mxu0
      %v512 = vadd.f32 0.0, %v511
      %v513 = vpop.f32.mrb[0].mxu0
      %v514 = vadd.f32 0.0, %v513
      %v515 = vpop.f32.mrb[0].mxu0
      %v516 = vadd.f32 0.0, %v515
      %517 = vmatprep.mubr.bf16.mxu0 0
      %518 = vmatmul.mubr.bf16.gmra.mrb[0].mxu0 %v424
      %v519 = vpop.f32.mrb[0].mxu0
      %v520 = vadd.f32 0.0, %v519
      %v521 = vpop.f32.mrb[0].mxu0
      %v522 = vadd.f32 0.0, %v521
      %v523 = vpop.f32.mrb[0].mxu0
      %v524 = vadd.f32 0.0, %v523
      %v525 = vpop.f32.mrb[0].mxu0
      %v526 = vadd.f32 0.0, %v525
      %527 = vmatprep.mubr.bf16.mxu0 0
      %528 = vmatmul.mubr.bf16.gmra.mrb[0].mxu0 %v427
      %v529 = vpop.f32.mrb[0].mxu0
      %v530 = vadd.f32 0.0, %v529
      %v531 = vpop.f32.mrb[0].mxu0
      %v532 = vadd.f32 0.0, %v531
      %v533 = vpop.f32.mrb[0].mxu0
      %v534 = vadd.f32 0.0, %v533
      %v535 = vpop.f32.mrb[0].mxu0
      %v536 = vadd.f32 0.0, %v535
      %537 = vmatprep.mubr.bf16.mxu0 0
      %538 = vmatmul.mubr.bf16.gmra.mrb[0].mxu0 %v430
      %v539 = vpop.f32.mrb[0].mxu0
      %v540 = vadd.f32 0.0, %v539
      %v541 = vpop.f32.mrb[0].mxu0
      %v542 = vadd.f32 0.0, %v541
      %v543 = vpop.f32.mrb[0].mxu0
      %v544 = vadd.f32 0.0, %v543
      %v545 = vpop.f32.mrb[0].mxu0
      %v546 = vadd.f32 0.0, %v545
      %547 = vmatprep.mubr.bf16.mxu0 0
      %548 = vmatmul.mubr.bf16.gmra.mrb[0].mxu0 %v433
      %v549 = vpop.f32.mrb[0].mxu0
      %v550 = vadd.f32 0.0, %v549
      %v551 = vpop.f32.mrb[0].mxu0
      %v552 = vadd.f32 0.0, %v551
      %v553 = vpop.f32.mrb[0].mxu0
      %v554 = vadd.f32 0.0, %v553
      %v555 = vpop.f32.mrb[0].mxu0
      %v556 = vadd.f32 0.0, %v555
      %557 = vmatprep.mubr.bf16.mxu0 0
      %558 = vmatmul.mubr.bf16.gmra.mrb[0].mxu0 %v436
      %v559 = vpop.f32.mrb[0].mxu0
      %v560 = vadd.f32 0.0, %v559
      %v561 = vpop.f32.mrb[0].mxu0
      %v562 = vadd.f32 0.0, %v561
      %v563 = vpop.f32.mrb[0].mxu0
      %v564 = vadd.f32 0.0, %v563
      %v565 = vpop.f32.mrb[0].mxu0
      %v566 = vadd.f32 0.0, %v565
      %567 = vmatprep.mubr.bf16.mxu0 0
      %568 = vmatmul.mubr.bf16.gmra.mrb[0].mxu0 %v439
      %v569 = vpop.f32.mrb[0].mxu0
      %v570 = vadd.f32 0.0, %v569
      %v571 = vpop.f32.mrb[0].mxu0
      %v572 = vadd.f32 0.0, %v571
      %v573 = vpop.f32.mrb[0].mxu0
      %v574 = vadd.f32 0.0, %v573
      %v575 = vpop.f32.mrb[0].mxu0
      %v576 = vadd.f32 0.0, %v575
      %577 = vmatprep.mubr.bf16.mxu0 0
      %578 = vmatmul.mubr.bf16.gmra.mrb[0].mxu0 %v442
      %v579 = vpop.f32.mrb[0].mxu0
      %v580 = vadd.f32 0.0, %v579
      %v581 = vpop.f32.mrb[0].mxu0
      %v582 = vadd.f32 0.0, %v581
      %v583 = vpop.f32.mrb[0].mxu0
      %v584 = vadd.f32 0.0, %v583
      %v585 = vpop.f32.mrb[0].mxu0
      %v586 = vadd.f32 0.0, %v585
      %587 = vmatprep.mubr.bf16.mxu0 0
      %588 = vmatmul.mubr.bf16.gmra.mrb[0].mxu0 %v445
      %v589 = vpop.f32.mrb[0].mxu0
      %v590 = vadd.f32 0.0, %v589
      %v591 = vpop.f32.mrb[0].mxu0
      %v592 = vadd.f32 0.0, %v591
      %v593 = vpop.f32.mrb[0].mxu0
      %v594 = vadd.f32 0.0, %v593
      %v595 = vpop.f32.mrb[0].mxu0
      %v596 = vadd.f32 0.0, %v595
      %597 = vmatprep.mubr.bf16.mxu0 0
      %598 = vmatmul.mubr.bf16.gmra.mrb[0].mxu0 %v448
      %v599 = vpop.f32.mrb[0].mxu0
      %v600 = vadd.f32 0.0, %v599
      %v601 = vpop.f32.mrb[0].mxu0
      %v602 = vadd.f32 0.0, %v601
      %v603 = vpop.f32.mrb[0].mxu0
      %v604 = vadd.f32 0.0, %v603
      %v605 = vpop.f32.mrb[0].mxu0
      %v606 = vadd.f32 0.0, %v605
      %607 = vmatprep.mubr.bf16.mxu0 0
      %608 = vmatmul.mubr.bf16.gmra.mrb[0].mxu0 %v451
      %v609 = vpop.f32.mrb[0].mxu0
      %v610 = vadd.f32 0.0, %v609
      %v611 = vpop.f32.mrb[0].mxu0
      %v612 = vadd.f32 0.0, %v611
      %v613 = vpop.f32.mrb[0].mxu0
      %v614 = vadd.f32 0.0, %v613
      %v615 = vpop.f32.mrb[0].mxu0
      %v616 = vadd.f32 0.0, %v615
      %617 = vmatprep.mubr.bf16.mxu0 0
      %618 = vmatmul.mubr.bf16.gmra.mrb[0].mxu0 %v454
      %v619 = vpop.f32.mrb[0].mxu0
      %v620 = vadd.f32 0.0, %v619
      %v621 = vpop.f32.mrb[0].mxu0
      %v622 = vadd.f32 0.0, %v621
      %v623 = vpop.f32.mrb[0].mxu0
      %v624 = vadd.f32 0.0, %v623
      %v625 = vpop.f32.mrb[0].mxu0
      %v626 = vadd.f32 0.0, %v625
      %627 = vmatprep.mubr.bf16.mxu0 0
      %628 = vmatmul.mubr.bf16.gmra.mrb[0].mxu0 %v457
      %v629 = vpop.f32.mrb[0].mxu0
      %v630 = vadd.f32 0.0, %v629
      %v631 = vpop.f32.mrb[0].mxu0
      %v632 = vadd.f32 0.0, %v631
      %v633 = vpop.f32.mrb[0].mxu0
      %v634 = vadd.f32 0.0, %v633
      %v635 = vpop.f32.mrb[0].mxu0
      %v636 = vadd.f32 0.0, %v635
      %637 = vmatprep.mubr.bf16.mxu0 0
      %638 = vmatmul.mubr.bf16.gmra.mrb[0].mxu0 %v460
      %v639 = vpop.f32.mrb[0].mxu0
      %v640 = vadd.f32 0.0, %v639
      %v641 = vpop.f32.mrb[0].mxu0
      %v642 = vadd.f32 0.0, %v641
      %v643 = vpop.f32.mrb[0].mxu0
      %v644 = vadd.f32 0.0, %v643
      %v645 = vpop.f32.mrb[0].mxu0
      %v646 = vadd.f32 0.0, %v645
      %647 = vmatprep.mubr.bf16.mxu0 0
      %648 = vmatmul.mubr.bf16.gmra.mrb[0].mxu0 %v463
      %v649 = vpop.f32.mrb[0].mxu0
      %v650 = vadd.f32 0.0, %v649
      %v651 = vpop.f32.mrb[0].mxu0
      %v652 = vadd.f32 0.0, %v651
      %v653 = vpop.f32.mrb[0].mxu0
      %v654 = vadd.f32 0.0, %v653
      %v655 = vpop.f32.mrb[0].mxu0
      %v656 = vadd.f32 0.0, %v655
      %657 = vmatprep.mubr.bf16.mxu0 0
      %658 = vmatmul.mubr.bf16.gmra.mrb[0].mxu0 %v466
      %v659 = vpop.f32.mrb[0].mxu0
      %v660 = vadd.f32 0.0, %v659
      %v661 = vpop.f32.mrb[0].mxu0
      %v662 = vadd.f32 0.0, %v661
      %v663 = vpop.f32.mrb[0].mxu0
      %v664 = vadd.f32 0.0, %v663
      %v665 = vpop.f32.mrb[0].mxu0
      %v666 = vadd.f32 0.0, %v665
      %667 = vdwg.mxu0
      %v668 = vld [vmem:[%s254] sm:$0xff]
      %v669 = vld [vmem:[%s254 + $0x8] sm:$0xff]
      %v670 = vld [vmem:[%s254 + $0x10] sm:$0xff]
      %v671 = vld [vmem:[%s254 + $0x18] sm:$0xff]
      %v672 = vld [vmem:[%s254 + $0x20] sm:$0xff]
      %v673 = vld [vmem:[%s254 + $0x28] sm:$0xff]
      %v674 = vld [vmem:[%s254 + $0x30] sm:$0xff]
      %v675 = vld [vmem:[%s254 + $0x38] sm:$0xff]
      %v676 = vld [vmem:[%s254 + $0x40] sm:$0xff]
      %v677 = vld [vmem:[%s254 + $0x48] sm:$0xff]
      %v678 = vld [vmem:[%s254 + $0x50] sm:$0xff]
      %v679 = vld [vmem:[%s254 + $0x58] sm:$0xff]
      %v680 = vld [vmem:[%s254 + $0x60] sm:$0xff]
      %v681 = vld [vmem:[%s254 + $0x68] sm:$0xff]
      %v682 = vld [vmem:[%s254 + $0x70] sm:$0xff]
      %v683 = vld [vmem:[%s254 + $0x78] sm:$0xff]
      %v684 = vld [vmem:[%s254 + $0x80] sm:$0xff]
      %v685 = vld [vmem:[%s254 + $0x88] sm:$0xff]
      %v686 = vld [vmem:[%s254 + $0x90] sm:$0xff]
      %v687 = vld [vmem:[%s254 + $0x98] sm:$0xff]
      %v688 = vld [vmem:[%s254 + $0xa0] sm:$0xff]
      %v689 = vld [vmem:[%s254 + $0xa8] sm:$0xff]
      %v690 = vld [vmem:[%s254 + $0xb0] sm:$0xff]
      %v691 = vld [vmem:[%s254 + $0xb8] sm:$0xff]
      %v692 = vld [vmem:[%s254 + $0xc0] sm:$0xff]
      %v693 = vld [vmem:[%s254 + $0xc8] sm:$0xff]
      %v694 = vld [vmem:[%s254 + $0xd0] sm:$0xff]
      %v695 = vld [vmem:[%s254 + $0xd8] sm:$0xff]
      %v696 = vld [vmem:[%s254 + $0xe0] sm:$0xff]
      %v697 = vld [vmem:[%s254 + $0xe8] sm:$0xff]
      %v698 = vld [vmem:[%s254 + $0xf0] sm:$0xff]
      %v699 = vld [vmem:[%s254 + $0xf8] sm:$0xff]
      %v700 = vunpack.c.l.bf16 %v668
      %v701 = vunpack.c.h.bf16 %v668
      %v702 = vunpack.c.l.bf16 %v669
      %v703 = vunpack.c.h.bf16 %v669
      %v704 = vunpack.c.l.bf16 %v670
      %v705 = vunpack.c.h.bf16 %v670
      %v706 = vunpack.c.l.bf16 %v671
      %v707 = vunpack.c.h.bf16 %v671
      %v708 = vunpack.c.l.bf16 %v672
      %v709 = vunpack.c.h.bf16 %v672
      %v710 = vunpack.c.l.bf16 %v673
      %v711 = vunpack.c.h.bf16 %v673
      %v712 = vunpack.c.l.bf16 %v674
      %v713 = vunpack.c.h.bf16 %v674
      %v714 = vunpack.c.l.bf16 %v675
      %v715 = vunpack.c.h.bf16 %v675
      %v716 = vunpack.c.l.bf16 %v676
      %v717 = vunpack.c.h.bf16 %v676
      %v718 = vunpack.c.l.bf16 %v677
      %v719 = vunpack.c.h.bf16 %v677
      %v720 = vunpack.c.l.bf16 %v678
      %v721 = vunpack.c.h.bf16 %v678
      %v722 = vunpack.c.l.bf16 %v679
      %v723 = vunpack.c.h.bf16 %v679
      %v724 = vunpack.c.l.bf16 %v680
      %v725 = vunpack.c.h.bf16 %v680
      %v726 = vunpack.c.l.bf16 %v681
      %v727 = vunpack.c.h.bf16 %v681
      %v728 = vunpack.c.l.bf16 %v682
      %v729 = vunpack.c.h.bf16 %v682
      %v730 = vunpack.c.l.bf16 %v683
      %v731 = vunpack.c.h.bf16 %v683
      %v732 = vunpack.c.l.bf16 %v684
      %v733 = vunpack.c.h.bf16 %v684
      %v734 = vunpack.c.l.bf16 %v685
      %v735 = vunpack.c.h.bf16 %v685
      %v736 = vunpack.c.l.bf16 %v686
      %v737 = vunpack.c.h.bf16 %v686
      %v738 = vunpack.c.l.bf16 %v687
      %v739 = vunpack.c.h.bf16 %v687
      %v740 = vunpack.c.l.bf16 %v688
      %v741 = vunpack.c.h.bf16 %v688
      %v742 = vunpack.c.l.bf16 %v689
      %v743 = vunpack.c.h.bf16 %v689
      %v744 = vunpack.c.l.bf16 %v690
      %v745 = vunpack.c.h.bf16 %v690
      %v746 = vunpack.c.l.bf16 %v691
      %v747 = vunpack.c.h.bf16 %v691
      %v748 = vunpack.c.l.bf16 %v692
      %v749 = vunpack.c.h.bf16 %v692
      %v750 = vunpack.c.l.bf16 %v693
      %v751 = vunpack.c.h.bf16 %v693
      %v752 = vunpack.c.l.bf16 %v694
      %v753 = vunpack.c.h.bf16 %v694
      %v754 = vunpack.c.l.bf16 %v695
      %v755 = vunpack.c.h.bf16 %v695
      %v756 = vunpack.c.l.bf16 %v696
      %v757 = vunpack.c.h.bf16 %v696
      %v758 = vunpack.c.l.bf16 %v697
      %v759 = vunpack.c.h.bf16 %v697
      %v760 = vunpack.c.l.bf16 %v698
      %v761 = vunpack.c.h.bf16 %v698
      %v762 = vunpack.c.l.bf16 %v699
      %v763 = vunpack.c.h.bf16 %v699
      %v764 = vmul.f32 %v510, %v700
      %v765 = vmul.f32 %v512, %v701
      %v766 = vmul.f32 %v514, %v702
      %v767 = vmul.f32 %v516, %v703
      %v768 = vmul.f32 %v520, %v704
      %v769 = vmul.f32 %v522, %v705
      %v770 = vmul.f32 %v524, %v706
      %v771 = vmul.f32 %v526, %v707
      %v772 = vmul.f32 %v530, %v708
      %v773 = vmul.f32 %v532, %v709
      %v774 = vmul.f32 %v534, %v710
      %v775 = vmul.f32 %v536, %v711
      %v776 = vmul.f32 %v540, %v712
      %v777 = vmul.f32 %v542, %v713
      %v778 = vmul.f32 %v544, %v714
      %v779 = vmul.f32 %v546, %v715
      %v780 = vmul.f32 %v550, %v716
      %v781 = vmul.f32 %v552, %v717
      %v782 = vmul.f32 %v554, %v718
      %v783 = vmul.f32 %v556, %v719
      %v784 = vmul.f32 %v560, %v720
      %v785 = vmul.f32 %v562, %v721
      %v786 = vmul.f32 %v564, %v722
      %v787 = vmul.f32 %v566, %v723
      %v788 = vmul.f32 %v570, %v724
      %v789 = vmul.f32 %v572, %v725
      %v790 = vmul.f32 %v574, %v726
      %v791 = vmul.f32 %v576, %v727
      %v792 = vmul.f32 %v580, %v728
      %v793 = vmul.f32 %v582, %v729
      %v794 = vmul.f32 %v584, %v730
      %v795 = vmul.f32 %v586, %v731
      %v796 = vmul.f32 %v590, %v732
      %v797 = vmul.f32 %v592, %v733
      %v798 = vmul.f32 %v594, %v734
      %v799 = vmul.f32 %v596, %v735
      %v800 = vmul.f32 %v600, %v736
      %v801 = vmul.f32 %v602, %v737
      %v802 = vmul.f32 %v604, %v738
      %v803 = vmul.f32 %v606, %v739
      %v804 = vmul.f32 %v610, %v740
      %v805 = vmul.f32 %v612, %v741
      %v806 = vmul.f32 %v614, %v742
      %v807 = vmul.f32 %v616, %v743
      %v808 = vmul.f32 %v620, %v744
      %v809 = vmul.f32 %v622, %v745
      %v810 = vmul.f32 %v624, %v746
      %v811 = vmul.f32 %v626, %v747
      %v812 = vmul.f32 %v630, %v748
      %v813 = vmul.f32 %v632, %v749
      %v814 = vmul.f32 %v634, %v750
      %v815 = vmul.f32 %v636, %v751
      %v816 = vmul.f32 %v640, %v752
      %v817 = vmul.f32 %v642, %v753
      %v818 = vmul.f32 %v644, %v754
      %v819 = vmul.f32 %v646, %v755
      %v820 = vmul.f32 %v650, %v756
      %v821 = vmul.f32 %v652, %v757
      %v822 = vmul.f32 %v654, %v758
      %v823 = vmul.f32 %v656, %v759
      %v824 = vmul.f32 %v660, %v760
      %v825 = vmul.f32 %v662, %v761
      %v826 = vmul.f32 %v664, %v762
      %v827 = vmul.f32 %v666, %v763
      %v828 = vpack.c.bf16 %v766, %v764
      %v829 = vpack.c.bf16 %v767, %v765
      %v830 = vpack.c.bf16 %v770, %v768
      %v831 = vpack.c.bf16 %v771, %v769
      %v832 = vpack.c.bf16 %v774, %v772
      %v833 = vpack.c.bf16 %v775, %v773
      %v834 = vpack.c.bf16 %v778, %v776
      %v835 = vpack.c.bf16 %v779, %v777
      %v836 = vpack.c.bf16 %v782, %v780
      %v837 = vpack.c.bf16 %v783, %v781
      %v838 = vpack.c.bf16 %v786, %v784
      %v839 = vpack.c.bf16 %v787, %v785
      %v840 = vpack.c.bf16 %v790, %v788
      %v841 = vpack.c.bf16 %v791, %v789
      %v842 = vpack.c.bf16 %v794, %v792
      %v843 = vpack.c.bf16 %v795, %v793
      %v844 = vpack.c.bf16 %v798, %v796
      %v845 = vpack.c.bf16 %v799, %v797
      %v846 = vpack.c.bf16 %v802, %v800
      %v847 = vpack.c.bf16 %v803, %v801
      %v848 = vpack.c.bf16 %v806, %v804
      %v849 = vpack.c.bf16 %v807, %v805
      %v850 = vpack.c.bf16 %v810, %v808
      %v851 = vpack.c.bf16 %v811, %v809
      %v852 = vpack.c.bf16 %v814, %v812
      %v853 = vpack.c.bf16 %v815, %v813
      %v854 = vpack.c.bf16 %v818, %v816
      %v855 = vpack.c.bf16 %v819, %v817
      %v856 = vpack.c.bf16 %v822, %v820
      %v857 = vpack.c.bf16 %v823, %v821
      %v858 = vpack.c.bf16 %v826, %v824
      %v859 = vpack.c.bf16 %v827, %v825
      %v860 = vld [vmem:[%s3] sm:$0xf]
      %v861 = vld [vmem:[%s3 + $0x4] sm:$0xf]
      %v862 = vld [vmem:[%s3 + $0x8] sm:$0xf]
      %v863 = vld [vmem:[%s3 + $0xc] sm:$0xf]
      %v864 = vld [vmem:[%s3 + $0x10] sm:$0xf]
      %v865 = vld [vmem:[%s3 + $0x14] sm:$0xf]
      %v866 = vld [vmem:[%s3 + $0x18] sm:$0xf]
      %v867 = vld [vmem:[%s3 + $0x1c] sm:$0xf]
      %v868 = vld [vmem:[%s3 + $0x20] sm:$0xf]
      %v869 = vld [vmem:[%s3 + $0x24] sm:$0xf]
      %v870 = vld [vmem:[%s3 + $0x28] sm:$0xf]
      %v871 = vld [vmem:[%s3 + $0x2c] sm:$0xf]
      %v872 = vld [vmem:[%s3 + $0x30] sm:$0xf]
      %v873 = vld [vmem:[%s3 + $0x34] sm:$0xf]
      %v874 = vld [vmem:[%s3 + $0x38] sm:$0xf]
      %v875 = vld [vmem:[%s3 + $0x3c] sm:$0xf]
      %v876 = vld [vmem:[%s3 + $0x40] sm:$0xf]
      %v877 = vld [vmem:[%s3 + $0x44] sm:$0xf]
      %v896 = vunpack.c.l.b16 %v860
      %v897 = vunpack.c.l.b16 %v861
      %v898 = vunpack.c.l.b16 %v862
      %v899 = vunpack.c.l.b16 %v863
      %v900 = vunpack.c.l.b16 %v864
      %v901 = vunpack.c.l.b16 %v865
      %v902 = vunpack.c.l.b16 %v866
      %v903 = vunpack.c.l.b16 %v867
      %v904 = vunpack.c.l.b16 %v868
      %v905 = vunpack.c.l.b16 %v869
      %v906 = vunpack.c.l.b16 %v870
      %v907 = vunpack.c.l.b16 %v871
      %v908 = vunpack.c.l.b16 %v872
      %v909 = vunpack.c.l.b16 %v873
      %v910 = vunpack.c.l.b16 %v874
      %v911 = vunpack.c.l.b16 %v875
      %v912 = vunpack.c.l.b16 %v876
      %v913 = vunpack.c.l.b16 %v877
      %v914 = vpack.c.b16 %v897, %v896
      %v915 = vpack.c.b16 %v899, %v898
      %v916 = vpack.c.b16 %v901, %v900
      %v917 = vpack.c.b16 %v903, %v902
      %v918 = vpack.c.b16 %v905, %v904
      %v919 = vpack.c.b16 %v907, %v906
      %v920 = vpack.c.b16 %v909, %v908
      %v921 = vpack.c.b16 %v911, %v910
      %v922 = vpack.c.b16 %v913, %v912
      %vm932 = vcmask 130048
      %v934 = vsel %vm932, %v829, 0
      %v937 = vsel %vm932, %v831, 0
      %v940 = vsel %vm932, %v833, 0
      %v943 = vsel %vm932, %v835, 0
      %v946 = vsel %vm932, %v837, 0
      %v949 = vsel %vm932, %v839, 0
      %v952 = vsel %vm932, %v841, 0
      %v955 = vsel %vm932, %v843, 0
      %v958 = vsel %vm932, %v845, 0
      %v961 = vsel %vm932, %v847, 0
      %v964 = vsel %vm932, %v849, 0
      %v967 = vsel %vm932, %v851, 0
      %v970 = vsel %vm932, %v853, 0
      %v973 = vsel %vm932, %v855, 0
      %v976 = vsel %vm932, %v857, 0
      %v979 = vsel %vm932, %v859, 0
      %981 = vmatprep.subr.bf16.mxu0 0
      %982 = vmatpush1.bf16.msra.mxu0 %v914
      %983 = vmatprep.subr.bf16.mxu0 0
      %984 = vmatpush1.bf16.msra.mxu0 %v915
      %985 = vmatprep.subr.bf16.mxu0 0
      %986 = vmatpush1.bf16.msra.mxu0 %v916
      %987 = vmatprep.subr.bf16.mxu0 0
      %988 = vmatpush1.bf16.msra.mxu0 %v917
      %989 = vmatprep.subr.bf16.mxu0 0
      %990 = vmatpush1.bf16.msra.mxu0 %v918
      %991 = vmatprep.subr.bf16.mxu0 0
      %992 = vmatpush1.bf16.msra.mxu0 %v919
      %993 = vmatprep.subr.bf16.mxu0 0
      %994 = vmatpush1.bf16.msra.mxu0 %v920
      %995 = vmatprep.subr.bf16.mxu0 0
      %996 = vmatpush1.bf16.msra.mxu0 %v921
      %997 = vmatprep.subr.bf16.mxu0 0
      %998 = vmatpush1.bf16.msra.mxu0 %v922
      %999 = vmatprep.subr.bf16.mxu0 0
      %1000 = vmatpush1.bf16.msra.mxu0 0
      %1001 = vmatprep.subr.bf16.mxu0 0
      %1002 = vmatpush1.bf16.msra.mxu0 0
      %1003 = vmatprep.subr.bf16.mxu0 0
      %1004 = vmatpush1.bf16.msra.mxu0 0
      %1005 = vmatprep.subr.bf16.mxu0 0
      %1006 = vmatpush1.bf16.msra.mxu0 0
      %1007 = vmatprep.subr.bf16.mxu0 0
      %1008 = vmatpush1.bf16.msra.mxu0 0
      %1009 = vmatprep.subr.bf16.mxu0 0
      %1010 = vmatpush1.bf16.msra.mxu0 0
      %1011 = vmatprep.subr.bf16.mxu0 0
      %1012 = vmatpush1.bf16.msra.mxu0 0
      %1013 = vmatprep.mubr.bf16.mxu0 %v934
      %1014 = vmatmul.mubr.bf16.gmra.mrb[0].mxu0 %v828
      %v1015 = vpop.f32.mrb[0].mxu0
      %v1016 = vadd.f32 0.0, %v1015
      %v1017 = vpop.f32.mrb[0].mxu0
      %v1018 = vpop.f32.mrb[0].mxu0
      %v1019 = vadd.f32 0.0, %v1018
      %v1020 = vpop.f32.mrb[0].mxu0
      %1021 = vmatprep.mubr.bf16.mxu0 %v937
      %1022 = vmatmul.mubr.bf16.gmra.mrb[0].mxu0 %v830
      %v1023 = vpop.f32.mrb[0].mxu0
      %v1024 = vadd.f32 0.0, %v1023
      %v1025 = vpop.f32.mrb[0].mxu0
      %v1026 = vpop.f32.mrb[0].mxu0
      %v1027 = vadd.f32 0.0, %v1026
      %v1028 = vpop.f32.mrb[0].mxu0
      %1029 = vmatprep.mubr.bf16.mxu0 %v940
      %1030 = vmatmul.mubr.bf16.gmra.mrb[0].mxu0 %v832
      %v1031 = vpop.f32.mrb[0].mxu0
      %v1032 = vadd.f32 0.0, %v1031
      %v1033 = vpop.f32.mrb[0].mxu0
      %v1034 = vpop.f32.mrb[0].mxu0
      %v1035 = vadd.f32 0.0, %v1034
      %v1036 = vpop.f32.mrb[0].mxu0
      %1037 = vmatprep.mubr.bf16.mxu0 %v943
      %1038 = vmatmul.mubr.bf16.gmra.mrb[0].mxu0 %v834
      %v1039 = vpop.f32.mrb[0].mxu0
      %v1040 = vadd.f32 0.0, %v1039
      %v1041 = vpop.f32.mrb[0].mxu0
      %v1042 = vpop.f32.mrb[0].mxu0
      %v1043 = vadd.f32 0.0, %v1042
      %v1044 = vpop.f32.mrb[0].mxu0
      %1045 = vmatprep.mubr.bf16.mxu0 %v946
      %1046 = vmatmul.mubr.bf16.gmra.mrb[0].mxu0 %v836
      %v1047 = vpop.f32.mrb[0].mxu0
      %v1048 = vadd.f32 0.0, %v1047
      %v1049 = vpop.f32.mrb[0].mxu0
      %v1050 = vpop.f32.mrb[0].mxu0
      %v1051 = vadd.f32 0.0, %v1050
      %v1052 = vpop.f32.mrb[0].mxu0
      %1053 = vmatprep.mubr.bf16.mxu0 %v949
      %1054 = vmatmul.mubr.bf16.gmra.mrb[0].mxu0 %v838
      %v1055 = vpop.f32.mrb[0].mxu0
      %v1056 = vadd.f32 0.0, %v1055
      %v1057 = vpop.f32.mrb[0].mxu0
      %v1058 = vpop.f32.mrb[0].mxu0
      %v1059 = vadd.f32 0.0, %v1058
      %v1060 = vpop.f32.mrb[0].mxu0
      %1061 = vmatprep.mubr.bf16.mxu0 %v952
      %1062 = vmatmul.mubr.bf16.gmra.mrb[0].mxu0 %v840
      %v1063 = vpop.f32.mrb[0].mxu0
      %v1064 = vadd.f32 0.0, %v1063
      %v1065 = vpop.f32.mrb[0].mxu0
      %v1066 = vpop.f32.mrb[0].mxu0
      %v1067 = vadd.f32 0.0, %v1066
      %v1068 = vpop.f32.mrb[0].mxu0
      %1069 = vmatprep.mubr.bf16.mxu0 %v955
      %1070 = vmatmul.mubr.bf16.gmra.mrb[0].mxu0 %v842
      %v1071 = vpop.f32.mrb[0].mxu0
      %v1072 = vadd.f32 0.0, %v1071
      %v1073 = vpop.f32.mrb[0].mxu0
      %v1074 = vpop.f32.mrb[0].mxu0
      %v1075 = vadd.f32 0.0, %v1074
      %v1076 = vpop.f32.mrb[0].mxu0
      %1077 = vmatprep.mubr.bf16.mxu0 %v958
      %1078 = vmatmul.mubr.bf16.gmra.mrb[0].mxu0 %v844
      %v1079 = vpop.f32.mrb[0].mxu0
      %v1080 = vadd.f32 0.0, %v1079
      %v1081 = vpop.f32.mrb[0].mxu0
      %v1082 = vpop.f32.mrb[0].mxu0
      %v1083 = vadd.f32 0.0, %v1082
      %v1084 = vpop.f32.mrb[0].mxu0
      %1085 = vmatprep.mubr.bf16.mxu0 %v961
      %1086 = vmatmul.mubr.bf16.gmra.mrb[0].mxu0 %v846
      %v1087 = vpop.f32.mrb[0].mxu0
      %v1088 = vadd.f32 0.0, %v1087
      %v1089 = vpop.f32.mrb[0].mxu0
      %v1090 = vpop.f32.mrb[0].mxu0
      %v1091 = vadd.f32 0.0, %v1090
      %v1092 = vpop.f32.mrb[0].mxu0
      %1093 = vmatprep.mubr.bf16.mxu0 %v964
      %1094 = vmatmul.mubr.bf16.gmra.mrb[0].mxu0 %v848
      %v1095 = vpop.f32.mrb[0].mxu0
      %v1096 = vadd.f32 0.0, %v1095
      %v1097 = vpop.f32.mrb[0].mxu0
      %v1098 = vpop.f32.mrb[0].mxu0
      %v1099 = vadd.f32 0.0, %v1098
      %v1100 = vpop.f32.mrb[0].mxu0
      %1101 = vmatprep.mubr.bf16.mxu0 %v967
      %1102 = vmatmul.mubr.bf16.gmra.mrb[0].mxu0 %v850
      %v1103 = vpop.f32.mrb[0].mxu0
      %v1104 = vadd.f32 0.0, %v1103
      %v1105 = vpop.f32.mrb[0].mxu0
      %v1106 = vpop.f32.mrb[0].mxu0
      %v1107 = vadd.f32 0.0, %v1106
      %v1108 = vpop.f32.mrb[0].mxu0
      %1109 = vmatprep.mubr.bf16.mxu0 %v970
      %1110 = vmatmul.mubr.bf16.gmra.mrb[0].mxu0 %v852
      %v1111 = vpop.f32.mrb[0].mxu0
      %v1112 = vadd.f32 0.0, %v1111
      %v1113 = vpop.f32.mrb[0].mxu0
      %v1114 = vpop.f32.mrb[0].mxu0
      %v1115 = vadd.f32 0.0, %v1114
      %v1116 = vpop.f32.mrb[0].mxu0
      %1117 = vmatprep.mubr.bf16.mxu0 %v973
      %1118 = vmatmul.mubr.bf16.gmra.mrb[0].mxu0 %v854
      %v1119 = vpop.f32.mrb[0].mxu0
      %v1120 = vadd.f32 0.0, %v1119
      %v1121 = vpop.f32.mrb[0].mxu0
      %v1122 = vpop.f32.mrb[0].mxu0
      %v1123 = vadd.f32 0.0, %v1122
      %v1124 = vpop.f32.mrb[0].mxu0
      %1125 = vmatprep.mubr.bf16.mxu0 %v976
      %1126 = vmatmul.mubr.bf16.gmra.mrb[0].mxu0 %v856
      %v1127 = vpop.f32.mrb[0].mxu0
      %v1128 = vadd.f32 0.0, %v1127
      %v1129 = vpop.f32.mrb[0].mxu0
      %v1130 = vpop.f32.mrb[0].mxu0
      %v1131 = vadd.f32 0.0, %v1130
      %v1132 = vpop.f32.mrb[0].mxu0
      %1133 = vmatprep.mubr.bf16.mxu0 %v979
      %1134 = vmatmul.mubr.bf16.gmra.mrb[0].mxu0 %v858
      %v1135 = vpop.f32.mrb[0].mxu0
      %v1136 = vadd.f32 0.0, %v1135
      %v1137 = vpop.f32.mrb[0].mxu0
      %v1138 = vpop.f32.mrb[0].mxu0
      %v1139 = vadd.f32 0.0, %v1138
      %v1140 = vpop.f32.mrb[0].mxu0
      %1141 = vdwg.mxu0
      %1142 = vst [vmem:[%s274] sm:$0xff] %v1016
      %1143 = vst [vmem:[%s274 + $0x8] sm:$0xff] %v1019
      %1144 = vst [vmem:[%s274 + $0x10] sm:$0xff] %v1024
      %1145 = vst [vmem:[%s274 + $0x18] sm:$0xff] %v1027
      %1146 = vst [vmem:[%s274 + $0x20] sm:$0xff] %v1032
      %1147 = vst [vmem:[%s274 + $0x28] sm:$0xff] %v1035
      %1148 = vst [vmem:[%s274 + $0x30] sm:$0xff] %v1040
      %1149 = vst [vmem:[%s274 + $0x38] sm:$0xff] %v1043
      %1150 = vst [vmem:[%s274 + $0x40] sm:$0xff] %v1048
      %1151 = vst [vmem:[%s274 + $0x48] sm:$0xff] %v1051
      %1152 = vst [vmem:[%s274 + $0x50] sm:$0xff] %v1056
      %1153 = vst [vmem:[%s274 + $0x58] sm:$0xff] %v1059
      %1154 = vst [vmem:[%s274 + $0x60] sm:$0xff] %v1064
      %1155 = vst [vmem:[%s274 + $0x68] sm:$0xff] %v1067
      %1156 = vst [vmem:[%s274 + $0x70] sm:$0xff] %v1072
      %1157 = vst [vmem:[%s274 + $0x78] sm:$0xff] %v1075
      %1158 = vst [vmem:[%s274 + $0x80] sm:$0xff] %v1080
      %1159 = vst [vmem:[%s274 + $0x88] sm:$0xff] %v1083
      %1160 = vst [vmem:[%s274 + $0x90] sm:$0xff] %v1088
      %1161 = vst [vmem:[%s274 + $0x98] sm:$0xff] %v1091
      %1162 = vst [vmem:[%s274 + $0xa0] sm:$0xff] %v1096
      %1163 = vst [vmem:[%s274 + $0xa8] sm:$0xff] %v1099
      %1164 = vst [vmem:[%s274 + $0xb0] sm:$0xff] %v1104
      %1165 = vst [vmem:[%s274 + $0xb8] sm:$0xff] %v1107
      %1166 = vst [vmem:[%s274 + $0xc0] sm:$0xff] %v1112
      %1167 = vst [vmem:[%s274 + $0xc8] sm:$0xff] %v1115
      %1168 = vst [vmem:[%s274 + $0xd0] sm:$0xff] %v1120
      %1169 = vst [vmem:[%s274 + $0xd8] sm:$0xff] %v1123
      %1170 = vst [vmem:[%s274 + $0xe0] sm:$0xff] %v1128
      %1171 = vst [vmem:[%s274 + $0xe8] sm:$0xff] %v1131
      %1172 = vst [vmem:[%s274 + $0xf0] sm:$0xff] %v1136
      %1173 = vst [vmem:[%s274 + $0xf8] sm:$0xff] %v1139
      %s1174 = smul.u32 32, %s19
      %p1175 = scmp.lt.s32.totalorder %s20, 1
      %s1176 = scalar_select %p1175, %s20, 1
      %p1177 = scmp.lt.s32.totalorder %s1174, 31
      %s1178 = scalar_select %p1177, %s1174, 31
      %s1179 = smul.addr %s1176, 32
      %s1180 = sadd.s32 %s1178, %s1179
      %s1181 = smul.addr %s1180, 8
      %s1182 = scalar_lea.vmem %s4, %s1181
      // Predicated region
      $region37: #{deform_conv2d_forward.3} parent=35 // pred_check
        %p1183 = pneg %p145
      $region38: #{deform_conv2d_forward.3} parent=35 // pred_check_branch
        %1185 = sbr.rel (%p1183) target = $region40
      $region39: #{deform_conv2d_forward.3} parent=35 // pred_region
        %s1186 = smul.u32 32, %s19
      $region40: #{deform_conv2d_forward.3} parent=35 // pred_fallthru
        _
    $region36: #{deform_conv2d_forward.3} parent=5 // pred_fallthru
      _
    %p1187 = scmp.le.s32.totalorder 2, %s10
    // Predicated region
    $region41: #{deform_conv2d_forward.3} parent=5 // pred_check
      %p1188 = pneg %p1187
    $region42: #{deform_conv2d_forward.3} parent=5 // pred_check_branch
      %1190 = sbr.rel (%p1188) target = $region44
    $region43: #{deform_conv2d_forward.3} parent=5 // pred_region
      %s1191 = ssub.s32 %s10, 2
      // Predicated region
      $region45: #{deform_conv2d_forward.3} parent=43 // pred_check
        %p1192 = pneg %p151
      $region46: #{deform_conv2d_forward.3} parent=43 // pred_check_branch
        %1194 = sbr.rel (%p1192) target = $region48
      $region47: #{deform_conv2d_forward.3} parent=43 // pred_region
        %s1195 = smul.u32 32, %s21
        %p1196 = scmp.lt.s32.totalorder %s22, 1
        %s1197 = scalar_select %p1196, %s22, 1
        %p1198 = scmp.lt.s32.totalorder %s1195, 31
        %s1199 = scalar_select %p1198, %s1195, 31
        %s1200 = smul.addr %s1197, 32
        %s1201 = sadd.s32 %s1199, %s1200
        %s1202 = smul.addr %s1201, 8
        %s1203 = scalar_lea.vmem %s4, %s1202
      $region48: #{deform_conv2d_forward.3} parent=43 // pred_fallthru
        _
    $region44: #{deform_conv2d_forward.3} parent=5 // pred_fallthru
      _
  $region6: #{deform_conv2d_forward.3} parent=0 // loop_footer
    %s14 = sadd.s32 1, %s10
  $region7: #{deform_conv2d_forward.3} parent=0 // loop_footer_branch
    %9 = sbr.rel target = $region3
  $region8: #{deform_conv2d_forward.3} parent=0 // loop_exit
    _

</llo_original>
